<compile_context>
chip_gen: v6e
topology: v6e:2x2x1
jax: 0.10.0
libtpu: 0.0.40
codegen_flags: <defaults>
</compile_context>

<pallas_src>
import jax
import jax.numpy as jnp
from jax.experimental import pallas as pl
from jax.experimental.pallas import tpu as pltpu


# ----------------------------- Pallas kernel --------------------------------


def _gru_kernel(
    x_ref,       # (B, T, D)  f32
    wih0_ref,    # (D, 3H)    bf16
    whh0_ref,    # (H, 3H)    bf16
    b0_gi_ref,   # (1, 3H)    f32   bih0 with bhh0[r,z] folded into the r/z part
    b0_hn_ref,   # (1, H)     f32   bhh0 n-gate part
    w1_ref,      # (2H, 4H)   bf16  fused layer-1 weight: cols [rz_pre | gi_n | gh_n]
    b1_rz_ref,   # (1, 2H)    f32   bih1[r,z] + bhh1[r,z]
    b1_in_ref,   # (1, H)     f32   bih1 n-gate part
    b1_hn_ref,   # (1, H)     f32   bhh1 n-gate part
    wfc_ref,     # (H, O)     bf16
    bfc_ref,     # (1, O)     f32
    out_ref,     # (B, O)     f32
):
    B, T, D = x_ref.shape
    H = whh0_ref.shape[0]
    H2, H3 = 2 * H, 3 * H

    f32 = jnp.float32
    bf16 = jnp.bfloat16

    # ---- hoisted layer-0 input projection: one bf16 MXU matmul, f32 accum ----
    # (all layer-0 input-gate biases + the r/z hidden biases already folded into b0_gi)
    x2d = x_ref[...].reshape(B * T, D).astype(bf16)
    gi0 = jnp.dot(x2d, wih0_ref[...], preferred_element_type=f32) + b0_gi_ref[...]
    gi0 = gi0.reshape(B, T, H3)          # traced value -- no VMEM scratch round trip

    whh0 = whh0_ref[...]                 # (H, 3H) bf16
    w1 = w1_ref[...]                     # (2H, 4H) bf16

    # Pre-broadcast biases ONCE (broadcast_in_dim is not CSE'd across the unrolled loop).
    b0_hn = jnp.broadcast_to(b0_hn_ref[...], (B, H))
    b1_rz = jnp.broadcast_to(b1_rz_ref[...], (B, H2))
    b1_in = jnp.broadcast_to(b1_in_ref[...], (B, H))
    b1_hn = jnp.broadcast_to(b1_hn_ref[...], (B, H))

    h0 = jnp.zeros((B, H), f32)
    h1 = jnp.zeros((B, H), f32)

    # T is tiny & static -> fully unrolled Python loop (static gate slices, static gi0[:, t]).
    # TODO(synk): at production T, cap the unroll at 2-4 inside a T-chunk grid instead.
    for t in range(T):
        gi_t = gi0[:, t, :]                                              # (B, 3H)

        # ---- layer 0 (input projection hoisted; one hidden matmul per step) ----
        gh0 = jnp.dot(h0.astype(bf16), whh0, preferred_element_type=f32)  # (B, 3H)
        rz = jax.nn.sigmoid(gi_t[:, :H2] + gh0[:, :H2])
        r, z = rz[:, :H], rz[:, H:]
        n = jnp.tanh(gi_t[:, H2:] + r * (gh0[:, H2:] + b0_hn))
        h0 = (1.0 - z) * n + z * h0

        # ---- layer 1: single fused MXU push, output cols = [rz_pre | gi_n | gh_n] ----
        cat = jnp.concatenate([h0, h1], axis=-1).astype(bf16)             # (B, 2H)
        g1 = jnp.dot(cat, w1, preferred_element_type=f32)                 # (B, 4H)
        rz = jax.nn.sigmoid(g1[:, :H2] + b1_rz)
        r, z = rz[:, :H], rz[:, H:]
        n = jnp.tanh(g1[:, H2:H3] + b1_in + r * (g1[:, H3:] + b1_hn))
        h1 = (1.0 - z) * n + z * h1

    # ---- fc on the last timestep of the top layer --------------------------
    out_ref[...] = (
        jnp.dot(h1.astype(bf16), wfc_ref[...], preferred_element_type=f32)
        + bfc_ref[...]
    )


# ----------------------------- wrapper ---------------------------------------


@jax.jit
def gru_net_forward(x, params):
    """x: (B, T, D) float32. params: dict of PyTorch-convention weights."""
    B, T, D = x.shape
    H = params["weight_hh_l0"].shape[1]
    O = params["fc_weight"].shape[0]
    H2, H3 = 2 * H, 3 * H

    bf16 = jnp.bfloat16

    bih0 = params["bias_ih_l0"]
    bhh0 = params["bias_hh_l0"]
    bih1 = params["bias_ih_l1"]
    bhh1 = params["bias_hh_l1"]

    # Pre-folded biases (see kernel docstring).
    b0_gi = jnp.concatenate([bih0[:H2] + bhh0[:H2], bih0[H2:]]).reshape(1, H3)
    b0_hn = bhh0[H2:].reshape(1, H)
    b1_rz = (bih1[:H2] + bhh1[:H2]).reshape(1, H2)
    b1_in = bih1[H2:].reshape(1, H)
    b1_hn = bhh1[H2:].reshape(1, H)

    # Fused layer-1 weight: concat([h0, h1]) @ W1 gives
    #   cols [0:2H]  = h0 @ Wih1_rz^T + h1 @ Whh1_rz^T   (rz pre-activation sum)
    #   cols [2H:3H] = h0 @ Wih1_n^T                     (gi_n, kept separate)
    #   cols [3H:4H] = h1 @ Whh1_n^T                     (gh_n, kept separate)
    wih1T = params["weight_ih_l1"].T            # (H, 3H), cols [r|z|n]
    whh1T = params["weight_hh_l1"].T            # (H, 3H)
    zhh = jnp.zeros((H, H), jnp.float32)
    w1_fused = jnp.concatenate(
        [jnp.concatenate([wih1T[:, :H2], wih1T[:, H2:], zhh], axis=1),
         jnp.concatenate([whh1T[:, :H2], zhh, whh1T[:, H2:]], axis=1)],
        axis=0)                                  # (2H, 4H)

    args = (
        x,                                        # (B, T, D) -- no wrapper-side transpose
        params["weight_ih_l0"].T.astype(bf16),    # (D, 3H)
        params["weight_hh_l0"].T.astype(bf16),    # (H, 3H)
        b0_gi, b0_hn,
        w1_fused.astype(bf16),                    # (2H, 4H)
        b1_rz, b1_in, b1_hn,
        params["fc_weight"].T.astype(bf16),       # (H, O)
        params["fc_bias"].reshape(1, -1),
    )

    vmem_spec = pl.BlockSpec(memory_space=pltpu.MemorySpace.VMEM)

    return pl.pallas_call(
        _gru_kernel,
        out_shape=jax.ShapeDtypeStruct((B, O), jnp.float32),
        in_specs=[vmem_spec] * len(args),
        out_specs=vmem_spec,
        compiler_params=pltpu.CompilerParams(vmem_limit_bytes=64 * 1024 * 1024),
    )(*args)


# ----------------------------- pure-JAX reference ----------------------------


def gru_net_reference(x, params):
    H = params["weight_hh_l0"].shape[1]

    def cell(x_t, h_prev, wih, whh, bih, bhh):
        gi = x_t @ wih.T + bih
        gh = h_prev @ whh.T + bhh
        r = jax.nn.sigmoid(gi[:, :H] + gh[:, :H])
        z = jax.nn.sigmoid(gi[:, H:2 * H] + gh[:, H:2 * H])
        n = jnp.tanh(gi[:, 2 * H:] + r * gh[:, 2 * H:])
        return (1.0 - z) * n + z * h_prev

    def run_layer(inp, wih, whh, bih, bhh):
        B = inp.shape[0]
        h = jnp.zeros((B, H), jnp.float32)

        def step(h, x_t):
            h = cell(x_t, h, wih, whh, bih, bhh)
            return h, h

        _, hs = jax.lax.scan(step, h, jnp.transpose(inp, (1, 0, 2)))
        return jnp.transpose(hs, (1, 0, 2))

    h1 = run_layer(x, params["weight_ih_l0"], params["weight_hh_l0"],
                   params["bias_ih_l0"], params["bias_hh_l0"])
    h2 = run_layer(h1, params["weight_ih_l1"], params["weight_hh_l1"],
                   params["bias_ih_l1"], params["bias_hh_l1"])
    return h2[:, -1, :] @ params["fc_weight"].T + params["fc_bias"]


# ----------------------------- main ------------------------------------------


def _init_params(key, input_dim, hidden_dim, output_dim):
    """Deterministic init mimicking PyTorch's uniform(-1/sqrt(H), 1/sqrt(H))."""
    keys = jax.random.split(key, 12)
    k = 1.0 / jnp.sqrt(hidden_dim)
    u = lambda kk, shape, bound: jax.random.uniform(
        kk, shape, jnp.float32, minval=-bound, maxval=bound)
    kf = 1.0 / jnp.sqrt(hidden_dim)  # fc in_features = hidden_dim
    return {
        "weight_ih_l0": u(keys[0], (3 * hidden_dim, input_dim), k),
        "weight_hh_l0": u(keys[1], (3 * hidden_dim, hidden_dim), k),
        "bias_ih_l0":   u(keys[2], (3 * hidden_dim,), k),
        "bias_hh_l0":   u(keys[3], (3 * hidden_dim,), k),
        "weight_ih_l1": u(keys[4], (3 * hidden_dim, hidden_dim), k),
        "weight_hh_l1": u(keys[5], (3 * hidden_dim, hidden_dim), k),
        "bias_ih_l1":   u(keys[6], (3 * hidden_dim,), k),
        "bias_hh_l1":   u(keys[7], (3 * hidden_dim,), k),
        "fc_weight":    u(keys[8], (output_dim, hidden_dim), kf),
        "fc_bias":      u(keys[9], (output_dim,), kf),
    }


if __name__ == "__main__":
    B, T, D, H, O = 2, 8, 16, 32, 8  # batch, seq, input_dim, hidden_dim, output_dim

    key = jax.random.PRNGKey(0)
    kx, kp = jax.random.split(key)
    x = jax.random.normal(kx, (B, T, D), jnp.float32)
    params = _init_params(kp, D, H, O)

    out = gru_net_forward(x, params)
    out = jax.block_until_ready(out)

    ref = gru_net_reference(x, params)
    assert out.shape == (B, O), out.shape
    # bf16 MXU operands (f32 accumulation) -> looser tolerance than pure-f32.
    assert jnp.allclose(out, ref, atol=5e-2, rtol=5e-2), (
        f"mismatch: max abs err = {jnp.max(jnp.abs(out - ref))}")

    print("KERNEL_OK")
</pallas_src>

<mosaic_0001>
module attributes {stable_mosaic.version = 11 : i64} {
  func.func @_gru_kernel(%arg0: memref<2x8x16xf32, #tpu.memory_space<vmem>>, %arg1: memref<16x96xbf16, #tpu.memory_space<vmem>>, %arg2: memref<32x96xbf16, #tpu.memory_space<vmem>>, %arg3: memref<1x96xf32, #tpu.memory_space<vmem>>, %arg4: memref<1x32xf32, #tpu.memory_space<vmem>>, %arg5: memref<64x128xbf16, #tpu.memory_space<vmem>>, %arg6: memref<1x64xf32, #tpu.memory_space<vmem>>, %arg7: memref<1x32xf32, #tpu.memory_space<vmem>>, %arg8: memref<1x32xf32, #tpu.memory_space<vmem>>, %arg9: memref<32x8xbf16, #tpu.memory_space<vmem>>, %arg10: memref<1x8xf32, #tpu.memory_space<vmem>>, %arg11: memref<2x8xf32, #tpu.memory_space<vmem>>) attributes {dimension_semantics = [], scalar_prefetch = 0 : i64, scratch_operands = 0 : i64, tpu.core_type = #tpu.core_type<tc>} {
    %c0 = arith.constant 0 : index
    %c0_0 = arith.constant 0 : index
    %c0_1 = arith.constant 0 : index
    %0 = vector.load %arg0[%c0, %c0_0, %c0_1] : memref<2x8x16xf32, #tpu.memory_space<vmem>>, vector<2x8x16xf32>
    %1 = vector.shape_cast %0 : vector<2x8x16xf32> to vector<16x16xf32>
    %2 = arith.truncf %1 : vector<16x16xf32> to vector<16x16xbf16>
    %c0_2 = arith.constant 0 : index
    %c0_3 = arith.constant 0 : index
    %3 = vector.load %arg1[%c0_2, %c0_3] : memref<16x96xbf16, #tpu.memory_space<vmem>>, vector<16x96xbf16>
    %cst = arith.constant dense<0.000000e+00> : vector<16x96xf32>
    %4 = tpu.matmul %2, %3, %cst {dimension_numbers = #tpu.dot_dimension_numbers<[1], [0], [0], [1], [0, 0, 1, 1], [], []>} : vector<16x16xbf16>, vector<16x96xbf16>, vector<16x96xf32> -> vector<16x96xf32>
    %c0_4 = arith.constant 0 : index
    %c0_5 = arith.constant 0 : index
    %5 = vector.load %arg3[%c0_4, %c0_5] : memref<1x96xf32, #tpu.memory_space<vmem>>, vector<1x96xf32>
    %6 = vector.broadcast %5 : vector<1x96xf32> to vector<16x96xf32>
    %7 = arith.addf %4, %6 : vector<16x96xf32>
    %8 = vector.shape_cast %7 : vector<16x96xf32> to vector<2x8x96xf32>
    %c0_6 = arith.constant 0 : index
    %c0_7 = arith.constant 0 : index
    %9 = vector.load %arg2[%c0_6, %c0_7] : memref<32x96xbf16, #tpu.memory_space<vmem>>, vector<32x96xbf16>
    %c0_8 = arith.constant 0 : index
    %c0_9 = arith.constant 0 : index
    %10 = vector.load %arg5[%c0_8, %c0_9] : memref<64x128xbf16, #tpu.memory_space<vmem>>, vector<64x128xbf16>
    %c0_10 = arith.constant 0 : index
    %c0_11 = arith.constant 0 : index
    %11 = vector.load %arg4[%c0_10, %c0_11] : memref<1x32xf32, #tpu.memory_space<vmem>>, vector<1x32xf32>
    %12 = vector.shape_cast %11 : vector<1x32xf32> to vector<1x32xf32>
    %13 = vector.broadcast %12 : vector<1x32xf32> to vector<2x32xf32>
    %c0_12 = arith.constant 0 : index
    %c0_13 = arith.constant 0 : index
    %14 = vector.load %arg6[%c0_12, %c0_13] : memref<1x64xf32, #tpu.memory_space<vmem>>, vector<1x64xf32>
    %15 = vector.shape_cast %14 : vector<1x64xf32> to vector<1x64xf32>
    %16 = vector.broadcast %15 : vector<1x64xf32> to vector<2x64xf32>
    %c0_14 = arith.constant 0 : index
    %c0_15 = arith.constant 0 : index
    %17 = vector.load %arg7[%c0_14, %c0_15] : memref<1x32xf32, #tpu.memory_space<vmem>>, vector<1x32xf32>
    %18 = vector.shape_cast %17 : vector<1x32xf32> to vector<1x32xf32>
    %19 = vector.broadcast %18 : vector<1x32xf32> to vector<2x32xf32>
    %c0_16 = arith.constant 0 : index
    %c0_17 = arith.constant 0 : index
    %20 = vector.load %arg8[%c0_16, %c0_17] : memref<1x32xf32, #tpu.memory_space<vmem>>, vector<1x32xf32>
    %21 = vector.shape_cast %20 : vector<1x32xf32> to vector<1x32xf32>
    %22 = vector.broadcast %21 : vector<1x32xf32> to vector<2x32xf32>
    %cst_18 = arith.constant 0.000000e+00 : f32
    %23 = vector.broadcast %cst_18 : f32 to vector<2x32xf32>
    %cst_19 = arith.constant 0.000000e+00 : f32
    %24 = vector.broadcast %cst_19 : f32 to vector<2x32xf32>
    %25 = vector.extract_strided_slice %8 {offsets = [0, 0, 0], sizes = [2, 1, 96], strides = [1, 1, 1]} : vector<2x8x96xf32> to vector<2x1x96xf32>
    %26 = vector.shape_cast %25 : vector<2x1x96xf32> to vector<2x96xf32>
    %27 = arith.truncf %23 : vector<2x32xf32> to vector<2x32xbf16>
    %cst_20 = arith.constant dense<0.000000e+00> : vector<2x96xf32>
    %28 = tpu.matmul %27, %9, %cst_20 {dimension_numbers = #tpu.dot_dimension_numbers<[1], [0], [0], [1], [0, 0, 1, 1], [], []>} : vector<2x32xbf16>, vector<32x96xbf16>, vector<2x96xf32> -> vector<2x96xf32>
    %29 = vector.extract_strided_slice %26 {offsets = [0, 0], sizes = [2, 64], strides = [1, 1]} : vector<2x96xf32> to vector<2x64xf32>
    %30 = vector.extract_strided_slice %28 {offsets = [0, 0], sizes = [2, 64], strides = [1, 1]} : vector<2x96xf32> to vector<2x64xf32>
    %31 = arith.addf %29, %30 : vector<2x64xf32>
    %32 = arith.negf %31 : vector<2x64xf32>
    %33 = math.exp %32 : vector<2x64xf32>
    %cst_21 = arith.constant 1.000000e+00 : f32
    %34 = vector.broadcast %cst_21 : f32 to vector<2x64xf32>
    %35 = arith.addf %34, %33 : vector<2x64xf32>
    %36 = arith.divf %34, %35 : vector<2x64xf32>
    %37 = vector.extract_strided_slice %36 {offsets = [0, 0], sizes = [2, 32], strides = [1, 1]} : vector<2x64xf32> to vector<2x32xf32>
    %38 = vector.extract_strided_slice %36 {offsets = [0, 32], sizes = [2, 32], strides = [1, 1]} : vector<2x64xf32> to vector<2x32xf32>
    %39 = vector.extract_strided_slice %26 {offsets = [0, 64], sizes = [2, 32], strides = [1, 1]} : vector<2x96xf32> to vector<2x32xf32>
    %40 = vector.extract_strided_slice %28 {offsets = [0, 64], sizes = [2, 32], strides = [1, 1]} : vector<2x96xf32> to vector<2x32xf32>
    %41 = arith.addf %40, %13 : vector<2x32xf32>
    %42 = arith.mulf %37, %41 : vector<2x32xf32>
    %43 = arith.addf %39, %42 : vector<2x32xf32>
    %44 = math.tanh %43 : vector<2x32xf32>
    %cst_22 = arith.constant 1.000000e+00 : f32
    %45 = vector.broadcast %cst_22 : f32 to vector<2x32xf32>
    %46 = arith.subf %45, %38 : vector<2x32xf32>
    %47 = arith.mulf %46, %44 : vector<2x32xf32>
    %48 = arith.mulf %38, %23 : vector<2x32xf32>
    %49 = arith.addf %47, %48 : vector<2x32xf32>
    %50 = tpu.concatenate %49, %24 in 1 : vector<2x32xf32>, vector<2x32xf32> -> vector<2x64xf32>
    %51 = arith.truncf %50 : vector<2x64xf32> to vector<2x64xbf16>
    %cst_23 = arith.constant dense<0.000000e+00> : vector<2x128xf32>
    %52 = tpu.matmul %51, %10, %cst_23 {dimension_numbers = #tpu.dot_dimension_numbers<[1], [0], [0], [1], [0, 0, 1, 1], [], []>} : vector<2x64xbf16>, vector<64x128xbf16>, vector<2x128xf32> -> vector<2x128xf32>
    %53 = vector.extract_strided_slice %52 {offsets = [0, 0], sizes = [2, 64], strides = [1, 1]} : vector<2x128xf32> to vector<2x64xf32>
    %54 = arith.addf %53, %16 : vector<2x64xf32>
    %55 = arith.negf %54 : vector<2x64xf32>
    %56 = math.exp %55 : vector<2x64xf32>
    %cst_24 = arith.constant 1.000000e+00 : f32
    %57 = vector.broadcast %cst_24 : f32 to vector<2x64xf32>
    %58 = arith.addf %57, %56 : vector<2x64xf32>
    %59 = arith.divf %57, %58 : vector<2x64xf32>
    %60 = vector.extract_strided_slice %59 {offsets = [0, 0], sizes = [2, 32], strides = [1, 1]} : vector<2x64xf32> to vector<2x32xf32>
    %61 = vector.extract_strided_slice %59 {offsets = [0, 32], sizes = [2, 32], strides = [1, 1]} : vector<2x64xf32> to vector<2x32xf32>
    %62 = vector.extract_strided_slice %52 {offsets = [0, 64], sizes = [2, 32], strides = [1, 1]} : vector<2x128xf32> to vector<2x32xf32>
    %63 = arith.addf %62, %19 : vector<2x32xf32>
    %64 = vector.extract_strided_slice %52 {offsets = [0, 96], sizes = [2, 32], strides = [1, 1]} : vector<2x128xf32> to vector<2x32xf32>
    %65 = arith.addf %64, %22 : vector<2x32xf32>
    %66 = arith.mulf %60, %65 : vector<2x32xf32>
    %67 = arith.addf %63, %66 : vector<2x32xf32>
    %68 = math.tanh %67 : vector<2x32xf32>
    %cst_25 = arith.constant 1.000000e+00 : f32
    %69 = vector.broadcast %cst_25 : f32 to vector<2x32xf32>
    %70 = arith.subf %69, %61 : vector<2x32xf32>
    %71 = arith.mulf %70, %68 : vector<2x32xf32>
    %72 = arith.mulf %61, %24 : vector<2x32xf32>
    %73 = arith.addf %71, %72 : vector<2x32xf32>
    %74 = vector.extract_strided_slice %8 {offsets = [0, 1, 0], sizes = [2, 1, 96], strides = [1, 1, 1]} : vector<2x8x96xf32> to vector<2x1x96xf32>
    %75 = vector.shape_cast %74 : vector<2x1x96xf32> to vector<2x96xf32>
    %76 = arith.truncf %49 : vector<2x32xf32> to vector<2x32xbf16>
    %cst_26 = arith.constant dense<0.000000e+00> : vector<2x96xf32>
    %77 = tpu.matmul %76, %9, %cst_26 {dimension_numbers = #tpu.dot_dimension_numbers<[1], [0], [0], [1], [0, 0, 1, 1], [], []>} : vector<2x32xbf16>, vector<32x96xbf16>, vector<2x96xf32> -> vector<2x96xf32>
    %78 = vector.extract_strided_slice %75 {offsets = [0, 0], sizes = [2, 64], strides = [1, 1]} : vector<2x96xf32> to vector<2x64xf32>
    %79 = vector.extract_strided_slice %77 {offsets = [0, 0], sizes = [2, 64], strides = [1, 1]} : vector<2x96xf32> to vector<2x64xf32>
    %80 = arith.addf %78, %79 : vector<2x64xf32>
    %81 = arith.negf %80 : vector<2x64xf32>
    %82 = math.exp %81 : vector<2x64xf32>
    %cst_27 = arith.constant 1.000000e+00 : f32
    %83 = vector.broadcast %cst_27 : f32 to vector<2x64xf32>
    %84 = arith.addf %83, %82 : vector<2x64xf32>
    %85 = arith.divf %83, %84 : vector<2x64xf32>
    %86 = vector.extract_strided_slice %85 {offsets = [0, 0], sizes = [2, 32], strides = [1, 1]} : vector<2x64xf32> to vector<2x32xf32>
    %87 = vector.extract_strided_slice %85 {offsets = [0, 32], sizes = [2, 32], strides = [1, 1]} : vector<2x64xf32> to vector<2x32xf32>
    %88 = vector.extract_strided_slice %75 {offsets = [0, 64], sizes = [2, 32], strides = [1, 1]} : vector<2x96xf32> to vector<2x32xf32>
    %89 = vector.extract_strided_slice %77 {offsets = [0, 64], sizes = [2, 32], strides = [1, 1]} : vector<2x96xf32> to vector<2x32xf32>
    %90 = arith.addf %89, %13 : vector<2x32xf32>
    %91 = arith.mulf %86, %90 : vector<2x32xf32>
    %92 = arith.addf %88, %91 : vector<2x32xf32>
    %93 = math.tanh %92 : vector<2x32xf32>
    %cst_28 = arith.constant 1.000000e+00 : f32
    %94 = vector.broadcast %cst_28 : f32 to vector<2x32xf32>
    %95 = arith.subf %94, %87 : vector<2x32xf32>
    %96 = arith.mulf %95, %93 : vector<2x32xf32>
    %97 = arith.mulf %87, %49 : vector<2x32xf32>
    %98 = arith.addf %96, %97 : vector<2x32xf32>
    %99 = tpu.concatenate %98, %73 in 1 : vector<2x32xf32>, vector<2x32xf32> -> vector<2x64xf32>
    %100 = arith.truncf %99 : vector<2x64xf32> to vector<2x64xbf16>
    %cst_29 = arith.constant dense<0.000000e+00> : vector<2x128xf32>
    %101 = tpu.matmul %100, %10, %cst_29 {dimension_numbers = #tpu.dot_dimension_numbers<[1], [0], [0], [1], [0, 0, 1, 1], [], []>} : vector<2x64xbf16>, vector<64x128xbf16>, vector<2x128xf32> -> vector<2x128xf32>
    %102 = vector.extract_strided_slice %101 {offsets = [0, 0], sizes = [2, 64], strides = [1, 1]} : vector<2x128xf32> to vector<2x64xf32>
    %103 = arith.addf %102, %16 : vector<2x64xf32>
    %104 = arith.negf %103 : vector<2x64xf32>
    %105 = math.exp %104 : vector<2x64xf32>
    %cst_30 = arith.constant 1.000000e+00 : f32
    %106 = vector.broadcast %cst_30 : f32 to vector<2x64xf32>
    %107 = arith.addf %106, %105 : vector<2x64xf32>
    %108 = arith.divf %106, %107 : vector<2x64xf32>
    %109 = vector.extract_strided_slice %108 {offsets = [0, 0], sizes = [2, 32], strides = [1, 1]} : vector<2x64xf32> to vector<2x32xf32>
    %110 = vector.extract_strided_slice %108 {offsets = [0, 32], sizes = [2, 32], strides = [1, 1]} : vector<2x64xf32> to vector<2x32xf32>
    %111 = vector.extract_strided_slice %101 {offsets = [0, 64], sizes = [2, 32], strides = [1, 1]} : vector<2x128xf32> to vector<2x32xf32>
    %112 = arith.addf %111, %19 : vector<2x32xf32>
    %113 = vector.extract_strided_slice %101 {offsets = [0, 96], sizes = [2, 32], strides = [1, 1]} : vector<2x128xf32> to vector<2x32xf32>
    %114 = arith.addf %113, %22 : vector<2x32xf32>
    %115 = arith.mulf %109, %114 : vector<2x32xf32>
    %116 = arith.addf %112, %115 : vector<2x32xf32>
    %117 = math.tanh %116 : vector<2x32xf32>
    %cst_31 = arith.constant 1.000000e+00 : f32
    %118 = vector.broadcast %cst_31 : f32 to vector<2x32xf32>
    %119 = arith.subf %118, %110 : vector<2x32xf32>
    %120 = arith.mulf %119, %117 : vector<2x32xf32>
    %121 = arith.mulf %110, %73 : vector<2x32xf32>
    %122 = arith.addf %120, %121 : vector<2x32xf32>
    %123 = vector.extract_strided_slice %8 {offsets = [0, 2, 0], sizes = [2, 1, 96], strides = [1, 1, 1]} : vector<2x8x96xf32> to vector<2x1x96xf32>
    %124 = vector.shape_cast %123 : vector<2x1x96xf32> to vector<2x96xf32>
    %125 = arith.truncf %98 : vector<2x32xf32> to vector<2x32xbf16>
    %cst_32 = arith.constant dense<0.000000e+00> : vector<2x96xf32>
    %126 = tpu.matmul %125, %9, %cst_32 {dimension_numbers = #tpu.dot_dimension_numbers<[1], [0], [0], [1], [0, 0, 1, 1], [], []>} : vector<2x32xbf16>, vector<32x96xbf16>, vector<2x96xf32> -> vector<2x96xf32>
    %127 = vector.extract_strided_slice %124 {offsets = [0, 0], sizes = [2, 64], strides = [1, 1]} : vector<2x96xf32> to vector<2x64xf32>
    %128 = vector.extract_strided_slice %126 {offsets = [0, 0], sizes = [2, 64], strides = [1, 1]} : vector<2x96xf32> to vector<2x64xf32>
    %129 = arith.addf %127, %128 : vector<2x64xf32>
    %130 = arith.negf %129 : vector<2x64xf32>
    %131 = math.exp %130 : vector<2x64xf32>
    %cst_33 = arith.constant 1.000000e+00 : f32
    %132 = vector.broadcast %cst_33 : f32 to vector<2x64xf32>
    %133 = arith.addf %132, %131 : vector<2x64xf32>
    %134 = arith.divf %132, %133 : vector<2x64xf32>
    %135 = vector.extract_strided_slice %134 {offsets = [0, 0], sizes = [2, 32], strides = [1, 1]} : vector<2x64xf32> to vector<2x32xf32>
    %136 = vector.extract_strided_slice %134 {offsets = [0, 32], sizes = [2, 32], strides = [1, 1]} : vector<2x64xf32> to vector<2x32xf32>
    %137 = vector.extract_strided_slice %124 {offsets = [0, 64], sizes = [2, 32], strides = [1, 1]} : vector<2x96xf32> to vector<2x32xf32>
    %138 = vector.extract_strided_slice %126 {offsets = [0, 64], sizes = [2, 32], strides = [1, 1]} : vector<2x96xf32> to vector<2x32xf32>
    %139 = arith.addf %138, %13 : vector<2x32xf32>
    %140 = arith.mulf %135, %139 : vector<2x32xf32>
    %141 = arith.addf %137, %140 : vector<2x32xf32>
    %142 = math.tanh %141 : vector<2x32xf32>
    %cst_34 = arith.constant 1.000000e+00 : f32
    %143 = vector.broadcast %cst_34 : f32 to vector<2x32xf32>
    %144 = arith.subf %143, %136 : vector<2x32xf32>
    %145 = arith.mulf %144, %142 : vector<2x32xf32>
    %146 = arith.mulf %136, %98 : vector<2x32xf32>
    %147 = arith.addf %145, %146 : vector<2x32xf32>
    %148 = tpu.concatenate %147, %122 in 1 : vector<2x32xf32>, vector<2x32xf32> -> vector<2x64xf32>
    %149 = arith.truncf %148 : vector<2x64xf32> to vector<2x64xbf16>
    %cst_35 = arith.constant dense<0.000000e+00> : vector<2x128xf32>
    %150 = tpu.matmul %149, %10, %cst_35 {dimension_numbers = #tpu.dot_dimension_numbers<[1], [0], [0], [1], [0, 0, 1, 1], [], []>} : vector<2x64xbf16>, vector<64x128xbf16>, vector<2x128xf32> -> vector<2x128xf32>
    %151 = vector.extract_strided_slice %150 {offsets = [0, 0], sizes = [2, 64], strides = [1, 1]} : vector<2x128xf32> to vector<2x64xf32>
    %152 = arith.addf %151, %16 : vector<2x64xf32>
    %153 = arith.negf %152 : vector<2x64xf32>
    %154 = math.exp %153 : vector<2x64xf32>
    %cst_36 = arith.constant 1.000000e+00 : f32
    %155 = vector.broadcast %cst_36 : f32 to vector<2x64xf32>
    %156 = arith.addf %155, %154 : vector<2x64xf32>
    %157 = arith.divf %155, %156 : vector<2x64xf32>
    %158 = vector.extract_strided_slice %157 {offsets = [0, 0], sizes = [2, 32], strides = [1, 1]} : vector<2x64xf32> to vector<2x32xf32>
    %159 = vector.extract_strided_slice %157 {offsets = [0, 32], sizes = [2, 32], strides = [1, 1]} : vector<2x64xf32> to vector<2x32xf32>
    %160 = vector.extract_strided_slice %150 {offsets = [0, 64], sizes = [2, 32], strides = [1, 1]} : vector<2x128xf32> to vector<2x32xf32>
    %161 = arith.addf %160, %19 : vector<2x32xf32>
    %162 = vector.extract_strided_slice %150 {offsets = [0, 96], sizes = [2, 32], strides = [1, 1]} : vector<2x128xf32> to vector<2x32xf32>
    %163 = arith.addf %162, %22 : vector<2x32xf32>
    %164 = arith.mulf %158, %163 : vector<2x32xf32>
    %165 = arith.addf %161, %164 : vector<2x32xf32>
    %166 = math.tanh %165 : vector<2x32xf32>
    %cst_37 = arith.constant 1.000000e+00 : f32
    %167 = vector.broadcast %cst_37 : f32 to vector<2x32xf32>
    %168 = arith.subf %167, %159 : vector<2x32xf32>
    %169 = arith.mulf %168, %166 : vector<2x32xf32>
    %170 = arith.mulf %159, %122 : vector<2x32xf32>
    %171 = arith.addf %169, %170 : vector<2x32xf32>
    %172 = vector.extract_strided_slice %8 {offsets = [0, 3, 0], sizes = [2, 1, 96], strides = [1, 1, 1]} : vector<2x8x96xf32> to vector<2x1x96xf32>
    %173 = vector.shape_cast %172 : vector<2x1x96xf32> to vector<2x96xf32>
    %174 = arith.truncf %147 : vector<2x32xf32> to vector<2x32xbf16>
    %cst_38 = arith.constant dense<0.000000e+00> : vector<2x96xf32>
    %175 = tpu.matmul %174, %9, %cst_38 {dimension_numbers = #tpu.dot_dimension_numbers<[1], [0], [0], [1], [0, 0, 1, 1], [], []>} : vector<2x32xbf16>, vector<32x96xbf16>, vector<2x96xf32> -> vector<2x96xf32>
    %176 = vector.extract_strided_slice %173 {offsets = [0, 0], sizes = [2, 64], strides = [1, 1]} : vector<2x96xf32> to vector<2x64xf32>
    %177 = vector.extract_strided_slice %175 {offsets = [0, 0], sizes = [2, 64], strides = [1, 1]} : vector<2x96xf32> to vector<2x64xf32>
    %178 = arith.addf %176, %177 : vector<2x64xf32>
    %179 = arith.negf %178 : vector<2x64xf32>
    %180 = math.exp %179 : vector<2x64xf32>
    %cst_39 = arith.constant 1.000000e+00 : f32
    %181 = vector.broadcast %cst_39 : f32 to vector<2x64xf32>
    %182 = arith.addf %181, %180 : vector<2x64xf32>
    %183 = arith.divf %181, %182 : vector<2x64xf32>
    %184 = vector.extract_strided_slice %183 {offsets = [0, 0], sizes = [2, 32], strides = [1, 1]} : vector<2x64xf32> to vector<2x32xf32>
    %185 = vector.extract_strided_slice %183 {offsets = [0, 32], sizes = [2, 32], strides = [1, 1]} : vector<2x64xf32> to vector<2x32xf32>
    %186 = vector.extract_strided_slice %173 {offsets = [0, 64], sizes = [2, 32], strides = [1, 1]} : vector<2x96xf32> to vector<2x32xf32>
    %187 = vector.extract_strided_slice %175 {offsets = [0, 64], sizes = [2, 32], strides = [1, 1]} : vector<2x96xf32> to vector<2x32xf32>
    %188 = arith.addf %187, %13 : vector<2x32xf32>
    %189 = arith.mulf %184, %188 : vector<2x32xf32>
    %190 = arith.addf %186, %189 : vector<2x32xf32>
    %191 = math.tanh %190 : vector<2x32xf32>
    %cst_40 = arith.constant 1.000000e+00 : f32
    %192 = vector.broadcast %cst_40 : f32 to vector<2x32xf32>
    %193 = arith.subf %192, %185 : vector<2x32xf32>
    %194 = arith.mulf %193, %191 : vector<2x32xf32>
    %195 = arith.mulf %185, %147 : vector<2x32xf32>
    %196 = arith.addf %194, %195 : vector<2x32xf32>
    %197 = tpu.concatenate %196, %171 in 1 : vector<2x32xf32>, vector<2x32xf32> -> vector<2x64xf32>
    %198 = arith.truncf %197 : vector<2x64xf32> to vector<2x64xbf16>
    %cst_41 = arith.constant dense<0.000000e+00> : vector<2x128xf32>
    %199 = tpu.matmul %198, %10, %cst_41 {dimension_numbers = #tpu.dot_dimension_numbers<[1], [0], [0], [1], [0, 0, 1, 1], [], []>} : vector<2x64xbf16>, vector<64x128xbf16>, vector<2x128xf32> -> vector<2x128xf32>
    %200 = vector.extract_strided_slice %199 {offsets = [0, 0], sizes = [2, 64], strides = [1, 1]} : vector<2x128xf32> to vector<2x64xf32>
    %201 = arith.addf %200, %16 : vector<2x64xf32>
    %202 = arith.negf %201 : vector<2x64xf32>
    %203 = math.exp %202 : vector<2x64xf32>
    %cst_42 = arith.constant 1.000000e+00 : f32
    %204 = vector.broadcast %cst_42 : f32 to vector<2x64xf32>
    %205 = arith.addf %204, %203 : vector<2x64xf32>
    %206 = arith.divf %204, %205 : vector<2x64xf32>
    %207 = vector.extract_strided_slice %206 {offsets = [0, 0], sizes = [2, 32], strides = [1, 1]} : vector<2x64xf32> to vector<2x32xf32>
    %208 = vector.extract_strided_slice %206 {offsets = [0, 32], sizes = [2, 32], strides = [1, 1]} : vector<2x64xf32> to vector<2x32xf32>
    %209 = vector.extract_strided_slice %199 {offsets = [0, 64], sizes = [2, 32], strides = [1, 1]} : vector<2x128xf32> to vector<2x32xf32>
    %210 = arith.addf %209, %19 : vector<2x32xf32>
    %211 = vector.extract_strided_slice %199 {offsets = [0, 96], sizes = [2, 32], strides = [1, 1]} : vector<2x128xf32> to vector<2x32xf32>
    %212 = arith.addf %211, %22 : vector<2x32xf32>
    %213 = arith.mulf %207, %212 : vector<2x32xf32>
    %214 = arith.addf %210, %213 : vector<2x32xf32>
    %215 = math.tanh %214 : vector<2x32xf32>
    %cst_43 = arith.constant 1.000000e+00 : f32
    %216 = vector.broadcast %cst_43 : f32 to vector<2x32xf32>
    %217 = arith.subf %216, %208 : vector<2x32xf32>
    %218 = arith.mulf %217, %215 : vector<2x32xf32>
    %219 = arith.mulf %208, %171 : vector<2x32xf32>
    %220 = arith.addf %218, %219 : vector<2x32xf32>
    %221 = vector.extract_strided_slice %8 {offsets = [0, 4, 0], sizes = [2, 1, 96], strides = [1, 1, 1]} : vector<2x8x96xf32> to vector<2x1x96xf32>
    %222 = vector.shape_cast %221 : vector<2x1x96xf32> to vector<2x96xf32>
    %223 = arith.truncf %196 : vector<2x32xf32> to vector<2x32xbf16>
    %cst_44 = arith.constant dense<0.000000e+00> : vector<2x96xf32>
    %224 = tpu.matmul %223, %9, %cst_44 {dimension_numbers = #tpu.dot_dimension_numbers<[1], [0], [0], [1], [0, 0, 1, 1], [], []>} : vector<2x32xbf16>, vector<32x96xbf16>, vector<2x96xf32> -> vector<2x96xf32>
    %225 = vector.extract_strided_slice %222 {offsets = [0, 0], sizes = [2, 64], strides = [1, 1]} : vector<2x96xf32> to vector<2x64xf32>
    %226 = vector.extract_strided_slice %224 {offsets = [0, 0], sizes = [2, 64], strides = [1, 1]} : vector<2x96xf32> to vector<2x64xf32>
    %227 = arith.addf %225, %226 : vector<2x64xf32>
    %228 = arith.negf %227 : vector<2x64xf32>
    %229 = math.exp %228 : vector<2x64xf32>
    %cst_45 = arith.constant 1.000000e+00 : f32
    %230 = vector.broadcast %cst_45 : f32 to vector<2x64xf32>
    %231 = arith.addf %230, %229 : vector<2x64xf32>
    %232 = arith.divf %230, %231 : vector<2x64xf32>
    %233 = vector.extract_strided_slice %232 {offsets = [0, 0], sizes = [2, 32], strides = [1, 1]} : vector<2x64xf32> to vector<2x32xf32>
    %234 = vector.extract_strided_slice %232 {offsets = [0, 32], sizes = [2, 32], strides = [1, 1]} : vector<2x64xf32> to vector<2x32xf32>
    %235 = vector.extract_strided_slice %222 {offsets = [0, 64], sizes = [2, 32], strides = [1, 1]} : vector<2x96xf32> to vector<2x32xf32>
    %236 = vector.extract_strided_slice %224 {offsets = [0, 64], sizes = [2, 32], strides = [1, 1]} : vector<2x96xf32> to vector<2x32xf32>
    %237 = arith.addf %236, %13 : vector<2x32xf32>
    %238 = arith.mulf %233, %237 : vector<2x32xf32>
    %239 = arith.addf %235, %238 : vector<2x32xf32>
    %240 = math.tanh %239 : vector<2x32xf32>
    %cst_46 = arith.constant 1.000000e+00 : f32
    %241 = vector.broadcast %cst_46 : f32 to vector<2x32xf32>
    %242 = arith.subf %241, %234 : vector<2x32xf32>
    %243 = arith.mulf %242, %240 : vector<2x32xf32>
    %244 = arith.mulf %234, %196 : vector<2x32xf32>
    %245 = arith.addf %243, %244 : vector<2x32xf32>
    %246 = tpu.concatenate %245, %220 in 1 : vector<2x32xf32>, vector<2x32xf32> -> vector<2x64xf32>
    %247 = arith.truncf %246 : vector<2x64xf32> to vector<2x64xbf16>
    %cst_47 = arith.constant dense<0.000000e+00> : vector<2x128xf32>
    %248 = tpu.matmul %247, %10, %cst_47 {dimension_numbers = #tpu.dot_dimension_numbers<[1], [0], [0], [1], [0, 0, 1, 1], [], []>} : vector<2x64xbf16>, vector<64x128xbf16>, vector<2x128xf32> -> vector<2x128xf32>
    %249 = vector.extract_strided_slice %248 {offsets = [0, 0], sizes = [2, 64], strides = [1, 1]} : vector<2x128xf32> to vector<2x64xf32>
    %250 = arith.addf %249, %16 : vector<2x64xf32>
    %251 = arith.negf %250 : vector<2x64xf32>
    %252 = math.exp %251 : vector<2x64xf32>
    %cst_48 = arith.constant 1.000000e+00 : f32
    %253 = vector.broadcast %cst_48 : f32 to vector<2x64xf32>
    %254 = arith.addf %253, %252 : vector<2x64xf32>
    %255 = arith.divf %253, %254 : vector<2x64xf32>
    %256 = vector.extract_strided_slice %255 {offsets = [0, 0], sizes = [2, 32], strides = [1, 1]} : vector<2x64xf32> to vector<2x32xf32>
    %257 = vector.extract_strided_slice %255 {offsets = [0, 32], sizes = [2, 32], strides = [1, 1]} : vector<2x64xf32> to vector<2x32xf32>
    %258 = vector.extract_strided_slice %248 {offsets = [0, 64], sizes = [2, 32], strides = [1, 1]} : vector<2x128xf32> to vector<2x32xf32>
    %259 = arith.addf %258, %19 : vector<2x32xf32>
    %260 = vector.extract_strided_slice %248 {offsets = [0, 96], sizes = [2, 32], strides = [1, 1]} : vector<2x128xf32> to vector<2x32xf32>
    %261 = arith.addf %260, %22 : vector<2x32xf32>
    %262 = arith.mulf %256, %261 : vector<2x32xf32>
    %263 = arith.addf %259, %262 : vector<2x32xf32>
    %264 = math.tanh %263 : vector<2x32xf32>
    %cst_49 = arith.constant 1.000000e+00 : f32
    %265 = vector.broadcast %cst_49 : f32 to vector<2x32xf32>
    %266 = arith.subf %265, %257 : vector<2x32xf32>
    %267 = arith.mulf %266, %264 : vector<2x32xf32>
    %268 = arith.mulf %257, %220 : vector<2x32xf32>
    %269 = arith.addf %267, %268 : vector<2x32xf32>
    %270 = vector.extract_strided_slice %8 {offsets = [0, 5, 0], sizes = [2, 1, 96], strides = [1, 1, 1]} : vector<2x8x96xf32> to vector<2x1x96xf32>
    %271 = vector.shape_cast %270 : vector<2x1x96xf32> to vector<2x96xf32>
    %272 = arith.truncf %245 : vector<2x32xf32> to vector<2x32xbf16>
    %cst_50 = arith.constant dense<0.000000e+00> : vector<2x96xf32>
    %273 = tpu.matmul %272, %9, %cst_50 {dimension_numbers = #tpu.dot_dimension_numbers<[1], [0], [0], [1], [0, 0, 1, 1], [], []>} : vector<2x32xbf16>, vector<32x96xbf16>, vector<2x96xf32> -> vector<2x96xf32>
    %274 = vector.extract_strided_slice %271 {offsets = [0, 0], sizes = [2, 64], strides = [1, 1]} : vector<2x96xf32> to vector<2x64xf32>
    %275 = vector.extract_strided_slice %273 {offsets = [0, 0], sizes = [2, 64], strides = [1, 1]} : vector<2x96xf32> to vector<2x64xf32>
    %276 = arith.addf %274, %275 : vector<2x64xf32>
    %277 = arith.negf %276 : vector<2x64xf32>
    %278 = math.exp %277 : vector<2x64xf32>
    %cst_51 = arith.constant 1.000000e+00 : f32
    %279 = vector.broadcast %cst_51 : f32 to vector<2x64xf32>
    %280 = arith.addf %279, %278 : vector<2x64xf32>
    %281 = arith.divf %279, %280 : vector<2x64xf32>
    %282 = vector.extract_strided_slice %281 {offsets = [0, 0], sizes = [2, 32], strides = [1, 1]} : vector<2x64xf32> to vector<2x32xf32>
    %283 = vector.extract_strided_slice %281 {offsets = [0, 32], sizes = [2, 32], strides = [1, 1]} : vector<2x64xf32> to vector<2x32xf32>
    %284 = vector.extract_strided_slice %271 {offsets = [0, 64], sizes = [2, 32], strides = [1, 1]} : vector<2x96xf32> to vector<2x32xf32>
    %285 = vector.extract_strided_slice %273 {offsets = [0, 64], sizes = [2, 32], strides = [1, 1]} : vector<2x96xf32> to vector<2x32xf32>
    %286 = arith.addf %285, %13 : vector<2x32xf32>
    %287 = arith.mulf %282, %286 : vector<2x32xf32>
    %288 = arith.addf %284, %287 : vector<2x32xf32>
    %289 = math.tanh %288 : vector<2x32xf32>
    %cst_52 = arith.constant 1.000000e+00 : f32
    %290 = vector.broadcast %cst_52 : f32 to vector<2x32xf32>
    %291 = arith.subf %290, %283 : vector<2x32xf32>
    %292 = arith.mulf %291, %289 : vector<2x32xf32>
    %293 = arith.mulf %283, %245 : vector<2x32xf32>
    %294 = arith.addf %292, %293 : vector<2x32xf32>
    %295 = tpu.concatenate %294, %269 in 1 : vector<2x32xf32>, vector<2x32xf32> -> vector<2x64xf32>
    %296 = arith.truncf %295 : vector<2x64xf32> to vector<2x64xbf16>
    %cst_53 = arith.constant dense<0.000000e+00> : vector<2x128xf32>
    %297 = tpu.matmul %296, %10, %cst_53 {dimension_numbers = #tpu.dot_dimension_numbers<[1], [0], [0], [1], [0, 0, 1, 1], [], []>} : vector<2x64xbf16>, vector<64x128xbf16>, vector<2x128xf32> -> vector<2x128xf32>
    %298 = vector.extract_strided_slice %297 {offsets = [0, 0], sizes = [2, 64], strides = [1, 1]} : vector<2x128xf32> to vector<2x64xf32>
    %299 = arith.addf %298, %16 : vector<2x64xf32>
    %300 = arith.negf %299 : vector<2x64xf32>
    %301 = math.exp %300 : vector<2x64xf32>
    %cst_54 = arith.constant 1.000000e+00 : f32
    %302 = vector.broadcast %cst_54 : f32 to vector<2x64xf32>
    %303 = arith.addf %302, %301 : vector<2x64xf32>
    %304 = arith.divf %302, %303 : vector<2x64xf32>
    %305 = vector.extract_strided_slice %304 {offsets = [0, 0], sizes = [2, 32], strides = [1, 1]} : vector<2x64xf32> to vector<2x32xf32>
    %306 = vector.extract_strided_slice %304 {offsets = [0, 32], sizes = [2, 32], strides = [1, 1]} : vector<2x64xf32> to vector<2x32xf32>
    %307 = vector.extract_strided_slice %297 {offsets = [0, 64], sizes = [2, 32], strides = [1, 1]} : vector<2x128xf32> to vector<2x32xf32>
    %308 = arith.addf %307, %19 : vector<2x32xf32>
    %309 = vector.extract_strided_slice %297 {offsets = [0, 96], sizes = [2, 32], strides = [1, 1]} : vector<2x128xf32> to vector<2x32xf32>
    %310 = arith.addf %309, %22 : vector<2x32xf32>
    %311 = arith.mulf %305, %310 : vector<2x32xf32>
    %312 = arith.addf %308, %311 : vector<2x32xf32>
    %313 = math.tanh %312 : vector<2x32xf32>
    %cst_55 = arith.constant 1.000000e+00 : f32
    %314 = vector.broadcast %cst_55 : f32 to vector<2x32xf32>
    %315 = arith.subf %314, %306 : vector<2x32xf32>
    %316 = arith.mulf %315, %313 : vector<2x32xf32>
    %317 = arith.mulf %306, %269 : vector<2x32xf32>
    %318 = arith.addf %316, %317 : vector<2x32xf32>
    %319 = vector.extract_strided_slice %8 {offsets = [0, 6, 0], sizes = [2, 1, 96], strides = [1, 1, 1]} : vector<2x8x96xf32> to vector<2x1x96xf32>
    %320 = vector.shape_cast %319 : vector<2x1x96xf32> to vector<2x96xf32>
    %321 = arith.truncf %294 : vector<2x32xf32> to vector<2x32xbf16>
    %cst_56 = arith.constant dense<0.000000e+00> : vector<2x96xf32>
    %322 = tpu.matmul %321, %9, %cst_56 {dimension_numbers = #tpu.dot_dimension_numbers<[1], [0], [0], [1], [0, 0, 1, 1], [], []>} : vector<2x32xbf16>, vector<32x96xbf16>, vector<2x96xf32> -> vector<2x96xf32>
    %323 = vector.extract_strided_slice %320 {offsets = [0, 0], sizes = [2, 64], strides = [1, 1]} : vector<2x96xf32> to vector<2x64xf32>
    %324 = vector.extract_strided_slice %322 {offsets = [0, 0], sizes = [2, 64], strides = [1, 1]} : vector<2x96xf32> to vector<2x64xf32>
    %325 = arith.addf %323, %324 : vector<2x64xf32>
    %326 = arith.negf %325 : vector<2x64xf32>
    %327 = math.exp %326 : vector<2x64xf32>
    %cst_57 = arith.constant 1.000000e+00 : f32
    %328 = vector.broadcast %cst_57 : f32 to vector<2x64xf32>
    %329 = arith.addf %328, %327 : vector<2x64xf32>
    %330 = arith.divf %328, %329 : vector<2x64xf32>
    %331 = vector.extract_strided_slice %330 {offsets = [0, 0], sizes = [2, 32], strides = [1, 1]} : vector<2x64xf32> to vector<2x32xf32>
    %332 = vector.extract_strided_slice %330 {offsets = [0, 32], sizes = [2, 32], strides = [1, 1]} : vector<2x64xf32> to vector<2x32xf32>
    %333 = vector.extract_strided_slice %320 {offsets = [0, 64], sizes = [2, 32], strides = [1, 1]} : vector<2x96xf32> to vector<2x32xf32>
    %334 = vector.extract_strided_slice %322 {offsets = [0, 64], sizes = [2, 32], strides = [1, 1]} : vector<2x96xf32> to vector<2x32xf32>
    %335 = arith.addf %334, %13 : vector<2x32xf32>
    %336 = arith.mulf %331, %335 : vector<2x32xf32>
    %337 = arith.addf %333, %336 : vector<2x32xf32>
    %338 = math.tanh %337 : vector<2x32xf32>
    %cst_58 = arith.constant 1.000000e+00 : f32
    %339 = vector.broadcast %cst_58 : f32 to vector<2x32xf32>
    %340 = arith.subf %339, %332 : vector<2x32xf32>
    %341 = arith.mulf %340, %338 : vector<2x32xf32>
    %342 = arith.mulf %332, %294 : vector<2x32xf32>
    %343 = arith.addf %341, %342 : vector<2x32xf32>
    %344 = tpu.concatenate %343, %318 in 1 : vector<2x32xf32>, vector<2x32xf32> -> vector<2x64xf32>
    %345 = arith.truncf %344 : vector<2x64xf32> to vector<2x64xbf16>
    %cst_59 = arith.constant dense<0.000000e+00> : vector<2x128xf32>
    %346 = tpu.matmul %345, %10, %cst_59 {dimension_numbers = #tpu.dot_dimension_numbers<[1], [0], [0], [1], [0, 0, 1, 1], [], []>} : vector<2x64xbf16>, vector<64x128xbf16>, vector<2x128xf32> -> vector<2x128xf32>
    %347 = vector.extract_strided_slice %346 {offsets = [0, 0], sizes = [2, 64], strides = [1, 1]} : vector<2x128xf32> to vector<2x64xf32>
    %348 = arith.addf %347, %16 : vector<2x64xf32>
    %349 = arith.negf %348 : vector<2x64xf32>
    %350 = math.exp %349 : vector<2x64xf32>
    %cst_60 = arith.constant 1.000000e+00 : f32
    %351 = vector.broadcast %cst_60 : f32 to vector<2x64xf32>
    %352 = arith.addf %351, %350 : vector<2x64xf32>
    %353 = arith.divf %351, %352 : vector<2x64xf32>
    %354 = vector.extract_strided_slice %353 {offsets = [0, 0], sizes = [2, 32], strides = [1, 1]} : vector<2x64xf32> to vector<2x32xf32>
    %355 = vector.extract_strided_slice %353 {offsets = [0, 32], sizes = [2, 32], strides = [1, 1]} : vector<2x64xf32> to vector<2x32xf32>
    %356 = vector.extract_strided_slice %346 {offsets = [0, 64], sizes = [2, 32], strides = [1, 1]} : vector<2x128xf32> to vector<2x32xf32>
    %357 = arith.addf %356, %19 : vector<2x32xf32>
    %358 = vector.extract_strided_slice %346 {offsets = [0, 96], sizes = [2, 32], strides = [1, 1]} : vector<2x128xf32> to vector<2x32xf32>
    %359 = arith.addf %358, %22 : vector<2x32xf32>
    %360 = arith.mulf %354, %359 : vector<2x32xf32>
    %361 = arith.addf %357, %360 : vector<2x32xf32>
    %362 = math.tanh %361 : vector<2x32xf32>
    %cst_61 = arith.constant 1.000000e+00 : f32
    %363 = vector.broadcast %cst_61 : f32 to vector<2x32xf32>
    %364 = arith.subf %363, %355 : vector<2x32xf32>
    %365 = arith.mulf %364, %362 : vector<2x32xf32>
    %366 = arith.mulf %355, %318 : vector<2x32xf32>
    %367 = arith.addf %365, %366 : vector<2x32xf32>
    %368 = vector.extract_strided_slice %8 {offsets = [0, 7, 0], sizes = [2, 1, 96], strides = [1, 1, 1]} : vector<2x8x96xf32> to vector<2x1x96xf32>
    %369 = vector.shape_cast %368 : vector<2x1x96xf32> to vector<2x96xf32>
    %370 = arith.truncf %343 : vector<2x32xf32> to vector<2x32xbf16>
    %cst_62 = arith.constant dense<0.000000e+00> : vector<2x96xf32>
    %371 = tpu.matmul %370, %9, %cst_62 {dimension_numbers = #tpu.dot_dimension_numbers<[1], [0], [0], [1], [0, 0, 1, 1], [], []>} : vector<2x32xbf16>, vector<32x96xbf16>, vector<2x96xf32> -> vector<2x96xf32>
    %372 = vector.extract_strided_slice %369 {offsets = [0, 0], sizes = [2, 64], strides = [1, 1]} : vector<2x96xf32> to vector<2x64xf32>
    %373 = vector.extract_strided_slice %371 {offsets = [0, 0], sizes = [2, 64], strides = [1, 1]} : vector<2x96xf32> to vector<2x64xf32>
    %374 = arith.addf %372, %373 : vector<2x64xf32>
    %375 = arith.negf %374 : vector<2x64xf32>
    %376 = math.exp %375 : vector<2x64xf32>
    %cst_63 = arith.constant 1.000000e+00 : f32
    %377 = vector.broadcast %cst_63 : f32 to vector<2x64xf32>
    %378 = arith.addf %377, %376 : vector<2x64xf32>
    %379 = arith.divf %377, %378 : vector<2x64xf32>
    %380 = vector.extract_strided_slice %379 {offsets = [0, 0], sizes = [2, 32], strides = [1, 1]} : vector<2x64xf32> to vector<2x32xf32>
    %381 = vector.extract_strided_slice %379 {offsets = [0, 32], sizes = [2, 32], strides = [1, 1]} : vector<2x64xf32> to vector<2x32xf32>
    %382 = vector.extract_strided_slice %369 {offsets = [0, 64], sizes = [2, 32], strides = [1, 1]} : vector<2x96xf32> to vector<2x32xf32>
    %383 = vector.extract_strided_slice %371 {offsets = [0, 64], sizes = [2, 32], strides = [1, 1]} : vector<2x96xf32> to vector<2x32xf32>
    %384 = arith.addf %383, %13 : vector<2x32xf32>
    %385 = arith.mulf %380, %384 : vector<2x32xf32>
    %386 = arith.addf %382, %385 : vector<2x32xf32>
    %387 = math.tanh %386 : vector<2x32xf32>
    %cst_64 = arith.constant 1.000000e+00 : f32
    %388 = vector.broadcast %cst_64 : f32 to vector<2x32xf32>
    %389 = arith.subf %388, %381 : vector<2x32xf32>
    %390 = arith.mulf %389, %387 : vector<2x32xf32>
    %391 = arith.mulf %381, %343 : vector<2x32xf32>
    %392 = arith.addf %390, %391 : vector<2x32xf32>
    %393 = tpu.concatenate %392, %367 in 1 : vector<2x32xf32>, vector<2x32xf32> -> vector<2x64xf32>
    %394 = arith.truncf %393 : vector<2x64xf32> to vector<2x64xbf16>
    %cst_65 = arith.constant dense<0.000000e+00> : vector<2x128xf32>
    %395 = tpu.matmul %394, %10, %cst_65 {dimension_numbers = #tpu.dot_dimension_numbers<[1], [0], [0], [1], [0, 0, 1, 1], [], []>} : vector<2x64xbf16>, vector<64x128xbf16>, vector<2x128xf32> -> vector<2x128xf32>
    %396 = vector.extract_strided_slice %395 {offsets = [0, 0], sizes = [2, 64], strides = [1, 1]} : vector<2x128xf32> to vector<2x64xf32>
    %397 = arith.addf %396, %16 : vector<2x64xf32>
    %398 = arith.negf %397 : vector<2x64xf32>
    %399 = math.exp %398 : vector<2x64xf32>
    %cst_66 = arith.constant 1.000000e+00 : f32
    %400 = vector.broadcast %cst_66 : f32 to vector<2x64xf32>
    %401 = arith.addf %400, %399 : vector<2x64xf32>
    %402 = arith.divf %400, %401 : vector<2x64xf32>
    %403 = vector.extract_strided_slice %402 {offsets = [0, 0], sizes = [2, 32], strides = [1, 1]} : vector<2x64xf32> to vector<2x32xf32>
    %404 = vector.extract_strided_slice %402 {offsets = [0, 32], sizes = [2, 32], strides = [1, 1]} : vector<2x64xf32> to vector<2x32xf32>
    %405 = vector.extract_strided_slice %395 {offsets = [0, 64], sizes = [2, 32], strides = [1, 1]} : vector<2x128xf32> to vector<2x32xf32>
    %406 = arith.addf %405, %19 : vector<2x32xf32>
    %407 = vector.extract_strided_slice %395 {offsets = [0, 96], sizes = [2, 32], strides = [1, 1]} : vector<2x128xf32> to vector<2x32xf32>
    %408 = arith.addf %407, %22 : vector<2x32xf32>
    %409 = arith.mulf %403, %408 : vector<2x32xf32>
    %410 = arith.addf %406, %409 : vector<2x32xf32>
    %411 = math.tanh %410 : vector<2x32xf32>
    %cst_67 = arith.constant 1.000000e+00 : f32
    %412 = vector.broadcast %cst_67 : f32 to vector<2x32xf32>
    %413 = arith.subf %412, %404 : vector<2x32xf32>
    %414 = arith.mulf %413, %411 : vector<2x32xf32>
    %415 = arith.mulf %404, %367 : vector<2x32xf32>
    %416 = arith.addf %414, %415 : vector<2x32xf32>
    %417 = arith.truncf %416 : vector<2x32xf32> to vector<2x32xbf16>
    %c0_68 = arith.constant 0 : index
    %c0_69 = arith.constant 0 : index
    %418 = vector.load %arg9[%c0_68, %c0_69] : memref<32x8xbf16, #tpu.memory_space<vmem>>, vector<32x8xbf16>
    %cst_70 = arith.constant dense<0.000000e+00> : vector<2x8xf32>
    %419 = tpu.matmul %417, %418, %cst_70 {dimension_numbers = #tpu.dot_dimension_numbers<[1], [0], [0], [1], [0, 0, 1, 1], [], []>} : vector<2x32xbf16>, vector<32x8xbf16>, vector<2x8xf32> -> vector<2x8xf32>
    %c0_71 = arith.constant 0 : index
    %c0_72 = arith.constant 0 : index
    %420 = vector.load %arg10[%c0_71, %c0_72] : memref<1x8xf32, #tpu.memory_space<vmem>>, vector<1x8xf32>
    %421 = vector.broadcast %420 : vector<1x8xf32> to vector<2x8xf32>
    %422 = arith.addf %419, %421 : vector<2x8xf32>
    %c0_73 = arith.constant 0 : index
    %c0_74 = arith.constant 0 : index
    %423 = vector.load %arg11[%c0_73, %c0_74] : memref<2x8xf32, #tpu.memory_space<vmem>>, vector<2x8xf32>
    tpu.vector_store %arg11[%c0_73, %c0_74], %422 {strides = array<i32>} : memref<2x8xf32, #tpu.memory_space<vmem>>, vector<2x8xf32>,
    return
  }
}

</mosaic_0001>

<llo_original>
// kernel: gru_net_forward.1
$region0: #{gru_net_forward.1}
  #allocation0 [shape = 'u32[]', space=smem, size = 0x4, offset = 0x4, fixed_abs, tag = 'smem constant byte address 0x4 - core index']
  #allocation1 [shape = 'u32[144,128]{1,0:T(1,128)}', space=vmem, size = 0x12000, scoped, tag = 'internal scratch']
  %s0 = inlined_call_operand.vmem [shape: f32[2,8,16], index: 0, kind: input, shape index: {}]
  %s1 = inlined_call_operand.vmem [shape: bf16[16,96], index: 1, kind: input, shape index: {}]
  %s2 = inlined_call_operand.vmem [shape: bf16[32,96], index: 2, kind: input, shape index: {}]
  %s3 = inlined_call_operand.vmem [shape: f32[1,96], index: 3, kind: input, shape index: {}]
  %s4 = inlined_call_operand.vmem [shape: f32[1,32], index: 4, kind: input, shape index: {}]
  %s5 = inlined_call_operand.vmem [shape: bf16[64,128], index: 5, kind: input, shape index: {}]
  %s6 = inlined_call_operand.vmem [shape: f32[1,64], index: 6, kind: input, shape index: {}]
  %s7 = inlined_call_operand.vmem [shape: f32[1,32], index: 7, kind: input, shape index: {}]
  %s8 = inlined_call_operand.vmem [shape: f32[1,32], index: 8, kind: input, shape index: {}]
  %s9 = inlined_call_operand.vmem [shape: bf16[32,8], index: 9, kind: input, shape index: {}]
  %s10 = inlined_call_operand.vmem [shape: f32[1,8], index: 10, kind: input, shape index: {}]
  %s11 = inlined_call_operand.hbm [shape: f32[2,8], index: 11, kind: output, shape index: {}]
  %s12 = sld [smem:[#allocation0]]
  $region54: #{gru_net_forward.1} parent=0
    _
  %s14 = ssub.s32 1, %s12
  %s15 = scalar_select 0, %s14, %s12
  $region1: #{gru_net_forward.1} parent=0
    #allocation2 [shape = 'u8[1024]{0}', space=vmem, size = 0x400, scoped, tag = 'output window, operand 0, single buffered']
    #allocation3 [shape = 's32[1]{0}', space=sflag, size = 0x4, scoped, tag = 'scoped memory for gru_net_forward.1']
    %16 = vsyncpa [#allocation3], 0
    // Predicated region
    $region2: #{gru_net_forward.1} parent=1 // pred_check
      _
    $region3: #{gru_net_forward.1} parent=1 // pred_check_branch
      %18 = sbr.rel (0) target = $region5
    $region4: #{gru_net_forward.1} parent=1 // pred_region
      _
    $region5: #{gru_net_forward.1} parent=1 // pred_fallthru
      _
    // Predicated region
    $region6: #{gru_net_forward.1} parent=1 // pred_check
      _
    $region7: #{gru_net_forward.1} parent=1 // pred_check_branch
      %20 = sbr.rel (0) target = $region9
    $region8: #{gru_net_forward.1} parent=1 // pred_region
      _
    $region9: #{gru_net_forward.1} parent=1 // pred_fallthru
      _
    // Predicated region
    $region10: #{gru_net_forward.1} parent=1 // pred_check
      _
    $region11: #{gru_net_forward.1} parent=1 // pred_check_branch
      %22 = sbr.rel (0) target = $region13
    $region12: #{gru_net_forward.1} parent=1 // pred_region
      _
    $region13: #{gru_net_forward.1} parent=1 // pred_fallthru
      _
    // Predicated region
    $region14: #{gru_net_forward.1} parent=1 // pred_check
      _
    $region15: #{gru_net_forward.1} parent=1 // pred_check_branch
      %24 = sbr.rel (0) target = $region17
    $region16: #{gru_net_forward.1} parent=1 // pred_region
      _
    $region17: #{gru_net_forward.1} parent=1 // pred_fallthru
      _
    // Predicated region
    $region18: #{gru_net_forward.1} parent=1 // pred_check
      _
    $region19: #{gru_net_forward.1} parent=1 // pred_check_branch
      %26 = sbr.rel (0) target = $region21
    $region20: #{gru_net_forward.1} parent=1 // pred_region
      _
    $region21: #{gru_net_forward.1} parent=1 // pred_fallthru
      _
    // Predicated region
    $region22: #{gru_net_forward.1} parent=1 // pred_check
      _
    $region23: #{gru_net_forward.1} parent=1 // pred_check_branch
      %28 = sbr.rel (0) target = $region25
    $region24: #{gru_net_forward.1} parent=1 // pred_region
      _
    $region25: #{gru_net_forward.1} parent=1 // pred_fallthru
      _
    // Predicated region
    $region26: #{gru_net_forward.1} parent=1 // pred_check
      _
    $region27: #{gru_net_forward.1} parent=1 // pred_check_branch
      %30 = sbr.rel (0) target = $region29
    $region28: #{gru_net_forward.1} parent=1 // pred_region
      _
    $region29: #{gru_net_forward.1} parent=1 // pred_fallthru
      _
    // Predicated region
    $region30: #{gru_net_forward.1} parent=1 // pred_check
      _
    $region31: #{gru_net_forward.1} parent=1 // pred_check_branch
      %32 = sbr.rel (0) target = $region33
    $region32: #{gru_net_forward.1} parent=1 // pred_region
      _
    $region33: #{gru_net_forward.1} parent=1 // pred_fallthru
      _
    // Predicated region
    $region34: #{gru_net_forward.1} parent=1 // pred_check
      _
    $region35: #{gru_net_forward.1} parent=1 // pred_check_branch
      %34 = sbr.rel (0) target = $region37
    $region36: #{gru_net_forward.1} parent=1 // pred_region
      _
    $region37: #{gru_net_forward.1} parent=1 // pred_fallthru
      _
    // Predicated region
    $region38: #{gru_net_forward.1} parent=1 // pred_check
      _
    $region39: #{gru_net_forward.1} parent=1 // pred_check_branch
      %36 = sbr.rel (0) target = $region41
    $region40: #{gru_net_forward.1} parent=1 // pred_region
      _
    $region41: #{gru_net_forward.1} parent=1 // pred_fallthru
      _
    // Predicated region
    $region42: #{gru_net_forward.1} parent=1 // pred_check
      _
    $region43: #{gru_net_forward.1} parent=1 // pred_check_branch
      %38 = sbr.rel (0) target = $region45
    $region44: #{gru_net_forward.1} parent=1 // pred_region
      _
    $region45: #{gru_net_forward.1} parent=1 // pred_fallthru
      _
    %v40 = vld [vmem:[%s0] sm:$0xff]
    %v41 = vld [vmem:[%s0 + $0x8] sm:$0xff]
    %v42 = vpack.c.bf16 %v41, %v40
    %v43 = vld [vmem:[%s1] sm:$0xf]
    %v44 = vld [vmem:[%s1 + $0x4] sm:$0xf]
    %v45 = vld [vmem:[%s3] sm:$0x1]
    %v47 = vlaneseq
    %v48 = vshrl.u32 %v47, 7
    %v49 = vsub.s32 0, %v48
    %v50 = vrot.slane %v45, %v49
    %v54 = vunpack.c.l.b16 %v43
    %v55 = vunpack.c.l.b16 %v44
    %v56 = vpack.c.b16 %v55, %v54
    %vm58 = vcmask 130048
    %v60 = vsel %vm58, %v42, 0
    %62 = vmatprep.subr.bf16.mxu0 0
    %63 = vmatpush1.bf16.msra.mxu0 0
    %64 = vmatprep.subr.bf16.mxu0 0
    %65 = vmatpush1.bf16.msra.mxu0 0
    %66 = vmatprep.subr.bf16.mxu0 0
    %67 = vmatpush1.bf16.msra.mxu0 0
    %68 = vmatprep.subr.bf16.mxu0 0
    %69 = vmatpush1.bf16.msra.mxu0 0
    %70 = vmatprep.subr.bf16.mxu0 0
    %71 = vmatpush1.bf16.msra.mxu0 0
    %72 = vmatprep.subr.bf16.mxu0 0
    %73 = vmatpush1.bf16.msra.mxu0 0
    %74 = vmatprep.subr.bf16.mxu0 0
    %75 = vmatpush1.bf16.msra.mxu0 0
    %76 = vmatprep.subr.bf16.mxu0 0
    %77 = vmatpush1.bf16.msra.mxu0 %v56
    %78 = vmatprep.subr.bf16.mxu0 0
    %79 = vmatpush2.bf16.msra.mxu0 0
    %80 = vmatprep.subr.bf16.mxu0 0
    %81 = vmatpush2.bf16.msra.mxu0 0
    %82 = vmatprep.subr.bf16.mxu0 0
    %83 = vmatpush2.bf16.msra.mxu0 0
    %84 = vmatprep.subr.bf16.mxu0 0
    %85 = vmatpush2.bf16.msra.mxu0 0
    %86 = vmatprep.subr.bf16.mxu0 0
    %87 = vmatpush2.bf16.msra.mxu0 0
    %88 = vmatprep.subr.bf16.mxu0 0
    %89 = vmatpush2.bf16.msra.mxu0 0
    %90 = vmatprep.subr.bf16.mxu0 0
    %91 = vmatpush2.bf16.msra.mxu0 0
    %92 = vmatprep.subr.bf16.mxu0 0
    %93 = vmatpush2.bf16.msra.mxu0 0
    %94 = vmatprep.mubr.bf16.mxu0 0
    %95 = vmatmul.mubr.bf16.gmra.mxu0 %v60
    %v96 = vpop.f32.mrf.mxu0
    %v97 = vadd.f32 %v50, %v96
    %v98 = vpop.f32.mrf.mxu0
    %v99 = vpop.f32.mrf.mxu0
    %v100 = vadd.f32 %v50, %v99
    %v101 = vpop.f32.mrf.mxu0
    %102 = vdwg.mxu0
    %v103 = vld [vmem:[%s2] sm:$0xf]
    %v104 = vld [vmem:[%s2 + $0x4] sm:$0xf]
    %v105 = vld [vmem:[%s2 + $0x8] sm:$0xf]
    %v106 = vld [vmem:[%s2 + $0xc] sm:$0xf]
    %v107 = vld [vmem:[%s5] sm:$0xf]
    %v108 = vld [vmem:[%s5 + $0x4] sm:$0xf]
    %v109 = vld [vmem:[%s5 + $0x8] sm:$0xf]
    %v110 = vld [vmem:[%s5 + $0xc] sm:$0xf]
    %v111 = vld [vmem:[%s5 + $0x10] sm:$0xf]
    %v112 = vld [vmem:[%s5 + $0x14] sm:$0xf]
    %v113 = vld [vmem:[%s5 + $0x18] sm:$0xf]
    %v114 = vld [vmem:[%s5 + $0x1c] sm:$0xf]
    %v115 = vld [vmem:[%s4] sm:$0x1]
    %v117 = vlaneseq
    %v118 = vshrl.u32 %v117, 7
    %v119 = vsub.s32 0, %v118
    %v120 = vrot.slane %v115, %v119
    %v121 = vld [vmem:[%s6] sm:$0x1]
    %v123 = vlaneseq
    %v124 = vshrl.u32 %v123, 7
    %v125 = vsub.s32 0, %v124
    %v126 = vrot.slane %v121, %v125
    %v128 = vld [vmem:[%s7] sm:$0x1]
    %v130 = vlaneseq
    %v131 = vshrl.u32 %v130, 7
    %v132 = vsub.s32 0, %v131
    %v133 = vrot.slane %v128, %v132
    %v134 = vld [vmem:[%s8] sm:$0x1]
    %v136 = vlaneseq
    %v137 = vshrl.u32 %v136, 7
    %v138 = vsub.s32 0, %v137
    %v139 = vrot.slane %v134, %v138
    %v144 = vunpack.c.l.b16 %v103
    %v145 = vunpack.c.l.b16 %v104
    %v146 = vunpack.c.l.b16 %v105
    %v147 = vunpack.c.l.b16 %v106
    %v148 = vpack.c.b16 %v145, %v144
    %v149 = vpack.c.b16 %v147, %v146
    %vm152 = vcmask 261120
    %v154 = vsel %vm152, 0, 0
    %156 = vmatprep.subr.bf16.mxu0 0
    %157 = vmatpush1.bf16.msra.mxu0 0
    %158 = vmatprep.subr.bf16.mxu0 0
    %159 = vmatpush1.bf16.msra.mxu0 0
    %160 = vmatprep.subr.bf16.mxu0 0
    %161 = vmatpush1.bf16.msra.mxu0 0
    %162 = vmatprep.subr.bf16.mxu0 0
    %163 = vmatpush1.bf16.msra.mxu0 0
    %164 = vmatprep.subr.bf16.mxu0 0
    %165 = vmatpush1.bf16.msra.mxu0 0
    %166 = vmatprep.subr.bf16.mxu0 0
    %167 = vmatpush1.bf16.msra.mxu0 0
    %168 = vmatprep.subr.bf16.mxu0 0
    %169 = vmatpush1.bf16.msra.mxu0 %v149
    %170 = vmatprep.subr.bf16.mxu0 0
    %171 = vmatpush1.bf16.msra.mxu0 %v148
    %172 = vmatprep.subr.bf16.mxu0 0
    %173 = vmatpush2.bf16.msra.mxu0 0
    %174 = vmatprep.subr.bf16.mxu0 0
    %175 = vmatpush2.bf16.msra.mxu0 0
    %176 = vmatprep.subr.bf16.mxu0 0
    %177 = vmatpush2.bf16.msra.mxu0 0
    %178 = vmatprep.subr.bf16.mxu0 0
    %179 = vmatpush2.bf16.msra.mxu0 0
    %180 = vmatprep.subr.bf16.mxu0 0
    %181 = vmatpush2.bf16.msra.mxu0 0
    %182 = vmatprep.subr.bf16.mxu0 0
    %183 = vmatpush2.bf16.msra.mxu0 0
    %184 = vmatprep.subr.bf16.mxu0 0
    %185 = vmatpush2.bf16.msra.mxu0 0
    %186 = vmatprep.subr.bf16.mxu0 0
    %187 = vmatpush2.bf16.msra.mxu0 0
    %188 = vmatprep.mubr.bf16.mxu0 0
    %189 = vmatmul.mubr.bf16.gmra.mxu0 %v154
    %v190 = vpop.f32.mrf.mxu0
    %v191 = vadd.f32 0.0, %v190
    %v192 = vpop.f32.mrf.mxu0
    %v193 = vpop.f32.mrf.mxu0
    %v194 = vpop.f32.mrf.mxu0
    %195 = vdwg.mxu0
    %v197 = vrot.slane %v191, 1
    %v200 = vadd.f32 %v97, %v191
    %v201 = vadd.f32 %v100, %v197
    %v202 = vxor.u32 %v200, 2147483648
    %v203 = vxor.u32 %v201, 2147483648
    %v204 = vmul.f32 %v202, 1.442695
    %v205 = vpow.pop %v204
    %v206 = vmul.f32 %v203, 1.442695
    %v207 = vpow.pop %v206
    %v208 = vadd.f32 %v205, 1.0
    %v209 = vadd.f32 %v207, 1.0
    %v210 = vrcp.pop %v208
    %v211 = vmul.f32 1.0, %v210
    %v212 = vrcp.pop %v209
    %v213 = vmul.f32 1.0, %v212
    %214 = vrot.lane.b32.xlu0 %v120, 64
    %v215 = vpop.permute.xlu0 %214
    %v217 = vadd.f32 %v191, %v215
    %v219 = vrot.slane %v217, 1
    %220 = vrot.lane.b32.xlu0 %v217, 64
    %v221 = vpop.permute.xlu0 %220
    %222 = vrot.lane.b32.xlu0 %v219, 64
    %v223 = vpop.permute.xlu0 %222
    %v226 = vmul.f32 %v211, %v221
    %v227 = vmul.f32 %v213, %v223
    %230 = vrot.lane.b32.xlu0 %v226, 64
    %v231 = vpop.permute.xlu0 %230
    %232 = vrot.lane.b32.xlu0 %v227, 64
    %v233 = vpop.permute.xlu0 %232
    %v236 = vadd.f32 %v97, %v231
    %v237 = vadd.f32 %v100, %v233
    %v238 = vtanh.pop %v236
    %v239 = vtanh.pop %v237
    %v240 = vsub.f32 1.0, %v211
    %v241 = vsub.f32 1.0, %v213
    %244 = vrot.lane.b32.xlu0 %v238, 96
    %v245 = vpop.permute.xlu0 %244
    %246 = vrot.lane.b32.xlu0 %v239, 96
    %v247 = vpop.permute.xlu0 %246
    %v250 = vmul.f32 %v240, %v245
    %v251 = vmul.f32 %v241, %v247
    %v252 = vmul.f32 %v211, 0.0
    %v253 = vmul.f32 %v213, 0.0
    %v254 = vadd.f32 %v250, %v252
    %v255 = vadd.f32 %v251, %v253
    %v258 = vrot.slane %v255, 7
    %vm259 = vcmask 1041409
    %v260 = vsel %vm259, %v258, %v254
    %261 = vrot.lane.b32.xlu0 %v260, 96
    %v262 = vpop.permute.xlu0 %261
    %v264 = vsel %vm152, %v262, 0.0
    %v265 = vpack.c.bf16 %v264, %v264
    %v274 = vunpack.c.l.b16 %v107
    %v275 = vunpack.c.l.b16 %v108
    %v276 = vunpack.c.l.b16 %v109
    %v277 = vunpack.c.l.b16 %v110
    %v278 = vunpack.c.l.b16 %v111
    %v279 = vunpack.c.l.b16 %v112
    %v280 = vunpack.c.l.b16 %v113
    %v281 = vunpack.c.l.b16 %v114
    %v282 = vpack.c.b16 %v275, %v274
    %v283 = vpack.c.b16 %v277, %v276
    %v284 = vpack.c.b16 %v279, %v278
    %v285 = vpack.c.b16 %v281, %v280
    %vm290 = vcmask 523264
    %v292 = vsel %vm290, %v265, 0
    %294 = vmatprep.subr.bf16.mxu0 0
    %295 = vmatpush1.bf16.msra.mxu0 0
    %296 = vmatprep.subr.bf16.mxu0 0
    %297 = vmatpush1.bf16.msra.mxu0 0
    %298 = vmatprep.subr.bf16.mxu0 0
    %299 = vmatpush1.bf16.msra.mxu0 0
    %300 = vmatprep.subr.bf16.mxu0 0
    %301 = vmatpush1.bf16.msra.mxu0 0
    %302 = vmatprep.subr.bf16.mxu0 0
    %303 = vmatpush1.bf16.msra.mxu0 %v285
    %304 = vmatprep.subr.bf16.mxu0 0
    %305 = vmatpush1.bf16.msra.mxu0 %v284
    %306 = vmatprep.subr.bf16.mxu0 0
    %307 = vmatpush1.bf16.msra.mxu0 %v283
    %308 = vmatprep.subr.bf16.mxu0 0
    %309 = vmatpush1.bf16.msra.mxu0 %v282
    %310 = vmatprep.subr.bf16.mxu0 0
    %311 = vmatpush2.bf16.msra.mxu0 0
    %312 = vmatprep.subr.bf16.mxu0 0
    %313 = vmatpush2.bf16.msra.mxu0 0
    %314 = vmatprep.subr.bf16.mxu0 0
    %315 = vmatpush2.bf16.msra.mxu0 0
    %316 = vmatprep.subr.bf16.mxu0 0
    %317 = vmatpush2.bf16.msra.mxu0 0
    %318 = vmatprep.subr.bf16.mxu0 0
    %319 = vmatpush2.bf16.msra.mxu0 0
    %320 = vmatprep.subr.bf16.mxu0 0
    %321 = vmatpush2.bf16.msra.mxu0 0
    %322 = vmatprep.subr.bf16.mxu0 0
    %323 = vmatpush2.bf16.msra.mxu0 0
    %324 = vmatprep.subr.bf16.mxu0 0
    %325 = vmatpush2.bf16.msra.mxu0 0
    %326 = vmatprep.mubr.bf16.mxu0 0
    %327 = vmatmul.mubr.bf16.gmra.mxu0 %v292
    %v328 = vpop.f32.mrf.mxu0
    %v329 = vadd.f32 0.0, %v328
    %v330 = vpop.f32.mrf.mxu0
    %v331 = vpop.f32.mrf.mxu0
    %v332 = vpop.f32.mrf.mxu0
    %333 = vdwg.mxu0
    %v334 = vadd.f32 %v329, %v126
    %v335 = vxor.u32 %v334, 2147483648
    %v336 = vmul.f32 %v335, 1.442695
    %v337 = vpow.pop %v336
    %v338 = vadd.f32 %v337, 1.0
    %v339 = vrcp.pop %v338
    %v340 = vmul.f32 1.0, %v339
    %341 = vrot.lane.b32.xlu0 %v133, 64
    %v342 = vpop.permute.xlu0 %341
    %v344 = vadd.f32 %v329, %v342
    %345 = vrot.lane.b32.xlu0 %v139, 96
    %v346 = vpop.permute.xlu0 %345
    %v348 = vadd.f32 %v329, %v346
    %350 = vrot.lane.b32.xlu0 %v348, 32
    %v351 = vpop.permute.xlu0 %350
    %v353 = vmul.f32 %v340, %v351
    %355 = vrot.lane.b32.xlu0 %v353, 64
    %v356 = vpop.permute.xlu0 %355
    %v358 = vadd.f32 %v344, %v356
    %v359 = vtanh.pop %v358
    %v360 = vsub.f32 1.0, %v340
    %362 = vrot.lane.b32.xlu0 %v359, 96
    %v363 = vpop.permute.xlu0 %362
    %v365 = vmul.f32 %v360, %v363
    %v366 = vmul.f32 %v340, 0.0
    %v367 = vadd.f32 %v365, %v366
    %v368 = vpack.c.bf16 %v254, %v254
    %v369 = vpack.c.bf16 %v255, %v255
    %v372 = vunpack.c.l.b16 %v368
    %v373 = vunpack.c.l.b16 %v369
    %v374 = vrot.slane %v373, 7
    %v375 = vsel %vm259, %v374, %v372
    %v376 = vpack.c.b16 %v375, %v375
    %377 = vrot.lane.b32.xlu0 %v376, 96
    %v378 = vpop.permute.xlu0 %377
    %v380 = vsel %vm152, %v378, 0
    %382 = vmatprep.subr.bf16.mxu0 0
    %383 = vmatpush1.bf16.msra.mxu0 0
    %384 = vmatprep.subr.bf16.mxu0 0
    %385 = vmatpush1.bf16.msra.mxu0 0
    %386 = vmatprep.subr.bf16.mxu0 0
    %387 = vmatpush1.bf16.msra.mxu0 0
    %388 = vmatprep.subr.bf16.mxu0 0
    %389 = vmatpush1.bf16.msra.mxu0 0
    %390 = vmatprep.subr.bf16.mxu0 0
    %391 = vmatpush1.bf16.msra.mxu0 0
    %392 = vmatprep.subr.bf16.mxu0 0
    %393 = vmatpush1.bf16.msra.mxu0 0
    %394 = vmatprep.subr.bf16.mxu0 0
    %395 = vmatpush1.bf16.msra.mxu0 %v149
    %396 = vmatprep.subr.bf16.mxu0 0
    %397 = vmatpush1.bf16.msra.mxu0 %v148
    %398 = vmatprep.subr.bf16.mxu0 0
    %399 = vmatpush2.bf16.msra.mxu0 0
    %400 = vmatprep.subr.bf16.mxu0 0
    %401 = vmatpush2.bf16.msra.mxu0 0
    %402 = vmatprep.subr.bf16.mxu0 0
    %403 = vmatpush2.bf16.msra.mxu0 0
    %404 = vmatprep.subr.bf16.mxu0 0
    %405 = vmatpush2.bf16.msra.mxu0 0
    %406 = vmatprep.subr.bf16.mxu0 0
    %407 = vmatpush2.bf16.msra.mxu0 0
    %408 = vmatprep.subr.bf16.mxu0 0
    %409 = vmatpush2.bf16.msra.mxu0 0
    %410 = vmatprep.subr.bf16.mxu0 0
    %411 = vmatpush2.bf16.msra.mxu0 0
    %412 = vmatprep.subr.bf16.mxu0 0
    %413 = vmatpush2.bf16.msra.mxu0 0
    %414 = vmatprep.mubr.bf16.mxu0 0
    %415 = vmatmul.mubr.bf16.gmra.mxu0 %v380
    %v416 = vpop.f32.mrf.mxu0
    %v417 = vadd.f32 0.0, %v416
    %v418 = vpop.f32.mrf.mxu0
    %v419 = vpop.f32.mrf.mxu0
    %v420 = vpop.f32.mrf.mxu0
    %421 = vdwg.mxu0
    %v423 = vrot.slane %v417, 7
    %v426 = vadd.f32 %v97, %v423
    %v427 = vadd.f32 %v100, %v417
    %v428 = vxor.u32 %v426, 2147483648
    %v429 = vxor.u32 %v427, 2147483648
    %v430 = vmul.f32 %v428, 1.442695
    %v431 = vpow.pop %v430
    %v432 = vmul.f32 %v429, 1.442695
    %v433 = vpow.pop %v432
    %v434 = vadd.f32 %v431, 1.0
    %v435 = vadd.f32 %v433, 1.0
    %v436 = vrcp.pop %v434
    %v437 = vmul.f32 1.0, %v436
    %v438 = vrcp.pop %v435
    %v439 = vmul.f32 1.0, %v438
    %v440 = vadd.f32 %v417, %v215
    %v442 = vrot.slane %v440, 7
    %443 = vrot.lane.b32.xlu0 %v442, 64
    %v444 = vpop.permute.xlu0 %443
    %445 = vrot.lane.b32.xlu0 %v440, 64
    %v446 = vpop.permute.xlu0 %445
    %v449 = vmul.f32 %v437, %v444
    %v450 = vmul.f32 %v439, %v446
    %453 = vrot.lane.b32.xlu0 %v449, 64
    %v454 = vpop.permute.xlu0 %453
    %455 = vrot.lane.b32.xlu0 %v450, 64
    %v456 = vpop.permute.xlu0 %455
    %v459 = vadd.f32 %v97, %v454
    %v460 = vadd.f32 %v100, %v456
    %v461 = vtanh.pop %v459
    %v462 = vtanh.pop %v460
    %v463 = vsub.f32 1.0, %v437
    %v464 = vsub.f32 1.0, %v439
    %467 = vrot.lane.b32.xlu0 %v461, 96
    %v468 = vpop.permute.xlu0 %467
    %469 = vrot.lane.b32.xlu0 %v462, 96
    %v470 = vpop.permute.xlu0 %469
    %v473 = vmul.f32 %v463, %v468
    %v474 = vmul.f32 %v464, %v470
    %v475 = vrot.slane %v254, 7
    %v478 = vmul.f32 %v437, %v475
    %v479 = vmul.f32 %v439, %v258
    %v480 = vadd.f32 %v473, %v478
    %v481 = vadd.f32 %v474, %v479
    %v484 = vrot.slane %v481, 7
    %vm485 = vcmask 1042434
    %v486 = vsel %vm485, %v484, %v480
    %487 = vrot.lane.b32.xlu0 %v486, 96
    %v488 = vpop.permute.xlu0 %487
    %v491 = vrot.slane %v367, 7
    %v493 = vsel %vm152, %v488, %v491
    %v494 = vpack.c.bf16 %v493, %v493
    %v496 = vshrl.u32 %v494, 16
    %v498 = vshll.u32 %v494, 16
    %v500 = vrot.slane %v498, 1
    %v501 = vor.u32 %v496, %v500
    %v503 = vsel %vm290, %v501, 0
    %505 = vmatprep.subr.bf16.mxu0 0
    %506 = vmatpush1.bf16.msra.mxu0 0
    %507 = vmatprep.subr.bf16.mxu0 0
    %508 = vmatpush1.bf16.msra.mxu0 0
    %509 = vmatprep.subr.bf16.mxu0 0
    %510 = vmatpush1.bf16.msra.mxu0 0
    %511 = vmatprep.subr.bf16.mxu0 0
    %512 = vmatpush1.bf16.msra.mxu0 0
    %513 = vmatprep.subr.bf16.mxu0 0
    %514 = vmatpush1.bf16.msra.mxu0 %v285
    %515 = vmatprep.subr.bf16.mxu0 0
    %516 = vmatpush1.bf16.msra.mxu0 %v284
    %517 = vmatprep.subr.bf16.mxu0 0
    %518 = vmatpush1.bf16.msra.mxu0 %v283
    %519 = vmatprep.subr.bf16.mxu0 0
    %520 = vmatpush1.bf16.msra.mxu0 %v282
    %521 = vmatprep.subr.bf16.mxu0 0
    %522 = vmatpush2.bf16.msra.mxu0 0
    %523 = vmatprep.subr.bf16.mxu0 0
    %524 = vmatpush2.bf16.msra.mxu0 0
    %525 = vmatprep.subr.bf16.mxu0 0
    %526 = vmatpush2.bf16.msra.mxu0 0
    %527 = vmatprep.subr.bf16.mxu0 0
    %528 = vmatpush2.bf16.msra.mxu0 0
    %529 = vmatprep.subr.bf16.mxu0 0
    %530 = vmatpush2.bf16.msra.mxu0 0
    %531 = vmatprep.subr.bf16.mxu0 0
    %532 = vmatpush2.bf16.msra.mxu0 0
    %533 = vmatprep.subr.bf16.mxu0 0
    %534 = vmatpush2.bf16.msra.mxu0 0
    %535 = vmatprep.subr.bf16.mxu0 0
    %536 = vmatpush2.bf16.msra.mxu0 0
    %537 = vmatprep.mubr.bf16.mxu0 0
    %538 = vmatmul.mubr.bf16.gmra.mxu0 %v503
    %v539 = vpop.f32.mrf.mxu0
    %v540 = vadd.f32 0.0, %v539
    %v541 = vpop.f32.mrf.mxu0
    %v542 = vpop.f32.mrf.mxu0
    %v543 = vpop.f32.mrf.mxu0
    %544 = vdwg.mxu0
    %v545 = vadd.f32 %v540, %v126
    %v546 = vxor.u32 %v545, 2147483648
    %v547 = vmul.f32 %v546, 1.442695
    %v548 = vpow.pop %v547
    %v549 = vadd.f32 %v548, 1.0
    %v550 = vrcp.pop %v549
    %v551 = vmul.f32 1.0, %v550
    %v552 = vadd.f32 %v540, %v342
    %v553 = vadd.f32 %v540, %v346
    %555 = vrot.lane.b32.xlu0 %v553, 32
    %v556 = vpop.permute.xlu0 %555
    %v558 = vmul.f32 %v551, %v556
    %560 = vrot.lane.b32.xlu0 %v558, 64
    %v561 = vpop.permute.xlu0 %560
    %v563 = vadd.f32 %v552, %v561
    %v564 = vtanh.pop %v563
    %v565 = vsub.f32 1.0, %v551
    %567 = vrot.lane.b32.xlu0 %v564, 96
    %v568 = vpop.permute.xlu0 %567
    %v570 = vmul.f32 %v565, %v568
    %v571 = vmul.f32 %v551, %v367
    %v572 = vadd.f32 %v570, %v571
    %v573 = vpack.c.bf16 %v480, %v480
    %v574 = vpack.c.bf16 %v481, %v481
    %v577 = vunpack.c.l.b16 %v573
    %v578 = vunpack.c.l.b16 %v574
    %v579 = vrot.slane %v577, 1
    %v580 = vsel %vm259, %v578, %v579
    %v581 = vpack.c.b16 %v580, %v580
    %582 = vrot.lane.b32.xlu0 %v581, 96
    %v583 = vpop.permute.xlu0 %582
    %v585 = vsel %vm152, %v583, 0
    %587 = vmatprep.subr.bf16.mxu0 0
    %588 = vmatpush1.bf16.msra.mxu0 0
    %589 = vmatprep.subr.bf16.mxu0 0
    %590 = vmatpush1.bf16.msra.mxu0 0
    %591 = vmatprep.subr.bf16.mxu0 0
    %592 = vmatpush1.bf16.msra.mxu0 0
    %593 = vmatprep.subr.bf16.mxu0 0
    %594 = vmatpush1.bf16.msra.mxu0 0
    %595 = vmatprep.subr.bf16.mxu0 0
    %596 = vmatpush1.bf16.msra.mxu0 0
    %597 = vmatprep.subr.bf16.mxu0 0
    %598 = vmatpush1.bf16.msra.mxu0 0
    %599 = vmatprep.subr.bf16.mxu0 0
    %600 = vmatpush1.bf16.msra.mxu0 %v149
    %601 = vmatprep.subr.bf16.mxu0 0
    %602 = vmatpush1.bf16.msra.mxu0 %v148
    %603 = vmatprep.subr.bf16.mxu0 0
    %604 = vmatpush2.bf16.msra.mxu0 0
    %605 = vmatprep.subr.bf16.mxu0 0
    %606 = vmatpush2.bf16.msra.mxu0 0
    %607 = vmatprep.subr.bf16.mxu0 0
    %608 = vmatpush2.bf16.msra.mxu0 0
    %609 = vmatprep.subr.bf16.mxu0 0
    %610 = vmatpush2.bf16.msra.mxu0 0
    %611 = vmatprep.subr.bf16.mxu0 0
    %612 = vmatpush2.bf16.msra.mxu0 0
    %613 = vmatprep.subr.bf16.mxu0 0
    %614 = vmatpush2.bf16.msra.mxu0 0
    %615 = vmatprep.subr.bf16.mxu0 0
    %616 = vmatpush2.bf16.msra.mxu0 0
    %617 = vmatprep.subr.bf16.mxu0 0
    %618 = vmatpush2.bf16.msra.mxu0 0
    %619 = vmatprep.mubr.bf16.mxu0 0
    %620 = vmatmul.mubr.bf16.gmra.mxu0 %v585
    %v621 = vpop.f32.mrf.mxu0
    %v622 = vadd.f32 0.0, %v621
    %v623 = vpop.f32.mrf.mxu0
    %v624 = vpop.f32.mrf.mxu0
    %v625 = vpop.f32.mrf.mxu0
    %626 = vdwg.mxu0
    %v628 = vrot.slane %v622, 6
    %v629 = vrot.slane %v622, 7
    %v632 = vadd.f32 %v97, %v628
    %v633 = vadd.f32 %v100, %v629
    %v634 = vxor.u32 %v632, 2147483648
    %v635 = vxor.u32 %v633, 2147483648
    %v636 = vmul.f32 %v634, 1.442695
    %v637 = vpow.pop %v636
    %v638 = vmul.f32 %v635, 1.442695
    %v639 = vpow.pop %v638
    %v640 = vadd.f32 %v637, 1.0
    %v641 = vadd.f32 %v639, 1.0
    %v642 = vrcp.pop %v640
    %v643 = vmul.f32 1.0, %v642
    %v644 = vrcp.pop %v641
    %v645 = vmul.f32 1.0, %v644
    %v646 = vadd.f32 %v622, %v215
    %v648 = vrot.slane %v646, 6
    %v649 = vrot.slane %v646, 7
    %650 = vrot.lane.b32.xlu0 %v648, 64
    %v651 = vpop.permute.xlu0 %650
    %652 = vrot.lane.b32.xlu0 %v649, 64
    %v653 = vpop.permute.xlu0 %652
    %v656 = vmul.f32 %v643, %v651
    %v657 = vmul.f32 %v645, %v653
    %660 = vrot.lane.b32.xlu0 %v656, 64
    %v661 = vpop.permute.xlu0 %660
    %662 = vrot.lane.b32.xlu0 %v657, 64
    %v663 = vpop.permute.xlu0 %662
    %v666 = vadd.f32 %v97, %v661
    %v667 = vadd.f32 %v100, %v663
    %v668 = vtanh.pop %v666
    %v669 = vtanh.pop %v667
    %v670 = vsub.f32 1.0, %v643
    %v671 = vsub.f32 1.0, %v645
    %674 = vrot.lane.b32.xlu0 %v668, 96
    %v675 = vpop.permute.xlu0 %674
    %676 = vrot.lane.b32.xlu0 %v669, 96
    %v677 = vpop.permute.xlu0 %676
    %v680 = vmul.f32 %v670, %v675
    %v681 = vmul.f32 %v671, %v677
    %v682 = vrot.slane %v480, 7
    %v685 = vmul.f32 %v643, %v682
    %v686 = vmul.f32 %v645, %v484
    %v687 = vadd.f32 %v680, %v685
    %v688 = vadd.f32 %v681, %v686
    %v691 = vrot.slane %v688, 7
    %vm692 = vcmask 1043459
    %v693 = vsel %vm692, %v691, %v687
    %694 = vrot.lane.b32.xlu0 %v693, 96
    %v695 = vpop.permute.xlu0 %694
    %v698 = vrot.slane %v572, 6
    %v700 = vsel %vm152, %v695, %v698
    %v701 = vpack.c.bf16 %v700, %v700
    %v703 = vrot.slane %v701, 1
    %v705 = vsel %vm290, %v703, 0
    %707 = vmatprep.subr.bf16.mxu0 0
    %708 = vmatpush1.bf16.msra.mxu0 0
    %709 = vmatprep.subr.bf16.mxu0 0
    %710 = vmatpush1.bf16.msra.mxu0 0
    %711 = vmatprep.subr.bf16.mxu0 0
    %712 = vmatpush1.bf16.msra.mxu0 0
    %713 = vmatprep.subr.bf16.mxu0 0
    %714 = vmatpush1.bf16.msra.mxu0 0
    %715 = vmatprep.subr.bf16.mxu0 0
    %716 = vmatpush1.bf16.msra.mxu0 %v285
    %717 = vmatprep.subr.bf16.mxu0 0
    %718 = vmatpush1.bf16.msra.mxu0 %v284
    %719 = vmatprep.subr.bf16.mxu0 0
    %720 = vmatpush1.bf16.msra.mxu0 %v283
    %721 = vmatprep.subr.bf16.mxu0 0
    %722 = vmatpush1.bf16.msra.mxu0 %v282
    %723 = vmatprep.subr.bf16.mxu0 0
    %724 = vmatpush2.bf16.msra.mxu0 0
    %725 = vmatprep.subr.bf16.mxu0 0
    %726 = vmatpush2.bf16.msra.mxu0 0
    %727 = vmatprep.subr.bf16.mxu0 0
    %728 = vmatpush2.bf16.msra.mxu0 0
    %729 = vmatprep.subr.bf16.mxu0 0
    %730 = vmatpush2.bf16.msra.mxu0 0
    %731 = vmatprep.subr.bf16.mxu0 0
    %732 = vmatpush2.bf16.msra.mxu0 0
    %733 = vmatprep.subr.bf16.mxu0 0
    %734 = vmatpush2.bf16.msra.mxu0 0
    %735 = vmatprep.subr.bf16.mxu0 0
    %736 = vmatpush2.bf16.msra.mxu0 0
    %737 = vmatprep.subr.bf16.mxu0 0
    %738 = vmatpush2.bf16.msra.mxu0 0
    %739 = vmatprep.mubr.bf16.mxu0 0
    %740 = vmatmul.mubr.bf16.gmra.mxu0 %v705
    %v741 = vpop.f32.mrf.mxu0
    %v742 = vadd.f32 0.0, %v741
    %v743 = vpop.f32.mrf.mxu0
    %v744 = vpop.f32.mrf.mxu0
    %v745 = vpop.f32.mrf.mxu0
    %746 = vdwg.mxu0
    %v747 = vadd.f32 %v742, %v126
    %v748 = vxor.u32 %v747, 2147483648
    %v749 = vmul.f32 %v748, 1.442695
    %v750 = vpow.pop %v749
    %v751 = vadd.f32 %v750, 1.0
    %v752 = vrcp.pop %v751
    %v753 = vmul.f32 1.0, %v752
    %v754 = vadd.f32 %v742, %v342
    %v755 = vadd.f32 %v742, %v346
    %757 = vrot.lane.b32.xlu0 %v755, 32
    %v758 = vpop.permute.xlu0 %757
    %v760 = vmul.f32 %v753, %v758
    %762 = vrot.lane.b32.xlu0 %v760, 64
    %v763 = vpop.permute.xlu0 %762
    %v765 = vadd.f32 %v754, %v763
    %v766 = vtanh.pop %v765
    %v767 = vsub.f32 1.0, %v753
    %769 = vrot.lane.b32.xlu0 %v766, 96
    %v770 = vpop.permute.xlu0 %769
    %v772 = vmul.f32 %v767, %v770
    %v773 = vmul.f32 %v753, %v572
    %v774 = vadd.f32 %v772, %v773
    %v775 = vpack.c.bf16 %v687, %v687
    %v776 = vpack.c.bf16 %v688, %v688
    %v779 = vunpack.c.l.b16 %v775
    %v780 = vunpack.c.l.b16 %v776
    %v781 = vrot.slane %v779, 2
    %v782 = vrot.slane %v780, 1
    %v783 = vsel %vm259, %v782, %v781
    %v784 = vpack.c.b16 %v783, %v783
    %785 = vrot.lane.b32.xlu0 %v784, 96
    %v786 = vpop.permute.xlu0 %785
    %v788 = vsel %vm152, %v786, 0
    %790 = vmatprep.subr.bf16.mxu0 0
    %791 = vmatpush1.bf16.msra.mxu0 0
    %792 = vmatprep.subr.bf16.mxu0 0
    %793 = vmatpush1.bf16.msra.mxu0 0
    %794 = vmatprep.subr.bf16.mxu0 0
    %795 = vmatpush1.bf16.msra.mxu0 0
    %796 = vmatprep.subr.bf16.mxu0 0
    %797 = vmatpush1.bf16.msra.mxu0 0
    %798 = vmatprep.subr.bf16.mxu0 0
    %799 = vmatpush1.bf16.msra.mxu0 0
    %800 = vmatprep.subr.bf16.mxu0 0
    %801 = vmatpush1.bf16.msra.mxu0 0
    %802 = vmatprep.subr.bf16.mxu0 0
    %803 = vmatpush1.bf16.msra.mxu0 %v149
    %804 = vmatprep.subr.bf16.mxu0 0
    %805 = vmatpush1.bf16.msra.mxu0 %v148
    %806 = vmatprep.subr.bf16.mxu0 0
    %807 = vmatpush2.bf16.msra.mxu0 0
    %808 = vmatprep.subr.bf16.mxu0 0
    %809 = vmatpush2.bf16.msra.mxu0 0
    %810 = vmatprep.subr.bf16.mxu0 0
    %811 = vmatpush2.bf16.msra.mxu0 0
    %812 = vmatprep.subr.bf16.mxu0 0
    %813 = vmatpush2.bf16.msra.mxu0 0
    %814 = vmatprep.subr.bf16.mxu0 0
    %815 = vmatpush2.bf16.msra.mxu0 0
    %816 = vmatprep.subr.bf16.mxu0 0
    %817 = vmatpush2.bf16.msra.mxu0 0
    %818 = vmatprep.subr.bf16.mxu0 0
    %819 = vmatpush2.bf16.msra.mxu0 0
    %820 = vmatprep.subr.bf16.mxu0 0
    %821 = vmatpush2.bf16.msra.mxu0 0
    %822 = vmatprep.mubr.bf16.mxu0 0
    %823 = vmatmul.mubr.bf16.gmra.mxu0 %v788
    %v824 = vpop.f32.mrf.mxu0
    %v825 = vadd.f32 0.0, %v824
    %v826 = vpop.f32.mrf.mxu0
    %v827 = vpop.f32.mrf.mxu0
    %v828 = vpop.f32.mrf.mxu0
    %829 = vdwg.mxu0
    %v831 = vrot.slane %v825, 5
    %v832 = vrot.slane %v825, 6
    %v835 = vadd.f32 %v97, %v831
    %v836 = vadd.f32 %v100, %v832
    %v837 = vxor.u32 %v835, 2147483648
    %v838 = vxor.u32 %v836, 2147483648
    %v839 = vmul.f32 %v837, 1.442695
    %v840 = vpow.pop %v839
    %v841 = vmul.f32 %v838, 1.442695
    %v842 = vpow.pop %v841
    %v843 = vadd.f32 %v840, 1.0
    %v844 = vadd.f32 %v842, 1.0
    %v845 = vrcp.pop %v843
    %v846 = vmul.f32 1.0, %v845
    %v847 = vrcp.pop %v844
    %v848 = vmul.f32 1.0, %v847
    %v849 = vadd.f32 %v825, %v215
    %v851 = vrot.slane %v849, 5
    %v852 = vrot.slane %v849, 6
    %853 = vrot.lane.b32.xlu0 %v851, 64
    %v854 = vpop.permute.xlu0 %853
    %855 = vrot.lane.b32.xlu0 %v852, 64
    %v856 = vpop.permute.xlu0 %855
    %v859 = vmul.f32 %v846, %v854
    %v860 = vmul.f32 %v848, %v856
    %863 = vrot.lane.b32.xlu0 %v859, 64
    %v864 = vpop.permute.xlu0 %863
    %865 = vrot.lane.b32.xlu0 %v860, 64
    %v866 = vpop.permute.xlu0 %865
    %v869 = vadd.f32 %v97, %v864
    %v870 = vadd.f32 %v100, %v866
    %v871 = vtanh.pop %v869
    %v872 = vtanh.pop %v870
    %v873 = vsub.f32 1.0, %v846
    %v874 = vsub.f32 1.0, %v848
    %877 = vrot.lane.b32.xlu0 %v871, 96
    %v878 = vpop.permute.xlu0 %877
    %879 = vrot.lane.b32.xlu0 %v872, 96
    %v880 = vpop.permute.xlu0 %879
    %v883 = vmul.f32 %v873, %v878
    %v884 = vmul.f32 %v874, %v880
    %v885 = vrot.slane %v687, 7
    %v888 = vmul.f32 %v846, %v885
    %v889 = vmul.f32 %v848, %v691
    %v890 = vadd.f32 %v883, %v888
    %v891 = vadd.f32 %v884, %v889
    %v894 = vrot.slane %v891, 7
    %vm895 = vcmask 1044484
    %v896 = vsel %vm895, %v894, %v890
    %897 = vrot.lane.b32.xlu0 %v896, 96
    %v898 = vpop.permute.xlu0 %897
    %v901 = vrot.slane %v774, 5
    %v903 = vsel %vm152, %v898, %v901
    %v904 = vpack.c.bf16 %v903, %v903
    %v906 = vshrl.u32 %v904, 16
    %v908 = vrot.slane %v906, 1
    %v909 = vshll.u32 %v904, 16
    %v911 = vrot.slane %v909, 2
    %v912 = vor.u32 %v908, %v911
    %v914 = vsel %vm290, %v912, 0
    %916 = vmatprep.subr.bf16.mxu0 0
    %917 = vmatpush1.bf16.msra.mxu0 0
    %918 = vmatprep.subr.bf16.mxu0 0
    %919 = vmatpush1.bf16.msra.mxu0 0
    %920 = vmatprep.subr.bf16.mxu0 0
    %921 = vmatpush1.bf16.msra.mxu0 0
    %922 = vmatprep.subr.bf16.mxu0 0
    %923 = vmatpush1.bf16.msra.mxu0 0
    %924 = vmatprep.subr.bf16.mxu0 0
    %925 = vmatpush1.bf16.msra.mxu0 %v285
    %926 = vmatprep.subr.bf16.mxu0 0
    %927 = vmatpush1.bf16.msra.mxu0 %v284
    %928 = vmatprep.subr.bf16.mxu0 0
    %929 = vmatpush1.bf16.msra.mxu0 %v283
    %930 = vmatprep.subr.bf16.mxu0 0
    %931 = vmatpush1.bf16.msra.mxu0 %v282
    %932 = vmatprep.subr.bf16.mxu0 0
    %933 = vmatpush2.bf16.msra.mxu0 0
    %934 = vmatprep.subr.bf16.mxu0 0
    %935 = vmatpush2.bf16.msra.mxu0 0
    %936 = vmatprep.subr.bf16.mxu0 0
    %937 = vmatpush2.bf16.msra.mxu0 0
    %938 = vmatprep.subr.bf16.mxu0 0
    %939 = vmatpush2.bf16.msra.mxu0 0
    %940 = vmatprep.subr.bf16.mxu0 0
    %941 = vmatpush2.bf16.msra.mxu0 0
    %942 = vmatprep.subr.bf16.mxu0 0
    %943 = vmatpush2.bf16.msra.mxu0 0
    %944 = vmatprep.subr.bf16.mxu0 0
    %945 = vmatpush2.bf16.msra.mxu0 0
    %946 = vmatprep.subr.bf16.mxu0 0
    %947 = vmatpush2.bf16.msra.mxu0 0
    %948 = vmatprep.mubr.bf16.mxu0 0
    %949 = vmatmul.mubr.bf16.gmra.mxu0 %v914
    %v950 = vpop.f32.mrf.mxu0
    %v951 = vadd.f32 0.0, %v950
    %v952 = vpop.f32.mrf.mxu0
    %v953 = vpop.f32.mrf.mxu0
    %v954 = vpop.f32.mrf.mxu0
    %955 = vdwg.mxu0
    %v956 = vadd.f32 %v951, %v126
    %v957 = vxor.u32 %v956, 2147483648
    %v958 = vmul.f32 %v957, 1.442695
    %v959 = vpow.pop %v958
    %v960 = vadd.f32 %v959, 1.0
    %v961 = vrcp.pop %v960
    %v962 = vmul.f32 1.0, %v961
    %v963 = vadd.f32 %v951, %v342
    %v964 = vadd.f32 %v951, %v346
    %966 = vrot.lane.b32.xlu0 %v964, 32
    %v967 = vpop.permute.xlu0 %966
    %v969 = vmul.f32 %v962, %v967
    %971 = vrot.lane.b32.xlu0 %v969, 64
    %v972 = vpop.permute.xlu0 %971
    %v974 = vadd.f32 %v963, %v972
    %v975 = vtanh.pop %v974
    %v976 = vsub.f32 1.0, %v962
    %978 = vrot.lane.b32.xlu0 %v975, 96
    %v979 = vpop.permute.xlu0 %978
    %v981 = vmul.f32 %v976, %v979
    %v982 = vmul.f32 %v962, %v774
    %v983 = vadd.f32 %v981, %v982
    %v984 = vpack.c.bf16 %v890, %v890
    %v985 = vpack.c.bf16 %v891, %v891
    %v988 = vunpack.c.l.b16 %v984
    %v989 = vunpack.c.l.b16 %v985
    %v990 = vrot.slane %v988, 3
    %v991 = vrot.slane %v989, 2
    %v992 = vsel %vm259, %v991, %v990
    %v993 = vpack.c.b16 %v992, %v992
    %994 = vrot.lane.b32.xlu0 %v993, 96
    %v995 = vpop.permute.xlu0 %994
    %v997 = vsel %vm152, %v995, 0
    %999 = vmatprep.subr.bf16.mxu0 0
    %1000 = vmatpush1.bf16.msra.mxu0 0
    %1001 = vmatprep.subr.bf16.mxu0 0
    %1002 = vmatpush1.bf16.msra.mxu0 0
    %1003 = vmatprep.subr.bf16.mxu0 0
    %1004 = vmatpush1.bf16.msra.mxu0 0
    %1005 = vmatprep.subr.bf16.mxu0 0
    %1006 = vmatpush1.bf16.msra.mxu0 0
    %1007 = vmatprep.subr.bf16.mxu0 0
    %1008 = vmatpush1.bf16.msra.mxu0 0
    %1009 = vmatprep.subr.bf16.mxu0 0
    %1010 = vmatpush1.bf16.msra.mxu0 0
    %1011 = vmatprep.subr.bf16.mxu0 0
    %1012 = vmatpush1.bf16.msra.mxu0 %v149
    %1013 = vmatprep.subr.bf16.mxu0 0
    %1014 = vmatpush1.bf16.msra.mxu0 %v148
    %1015 = vmatprep.subr.bf16.mxu0 0
    %1016 = vmatpush2.bf16.msra.mxu0 0
    %1017 = vmatprep.subr.bf16.mxu0 0
    %1018 = vmatpush2.bf16.msra.mxu0 0
    %1019 = vmatprep.subr.bf16.mxu0 0
    %1020 = vmatpush2.bf16.msra.mxu0 0
    %1021 = vmatprep.subr.bf16.mxu0 0
    %1022 = vmatpush2.bf16.msra.mxu0 0
    %1023 = vmatprep.subr.bf16.mxu0 0
    %1024 = vmatpush2.bf16.msra.mxu0 0
    %1025 = vmatprep.subr.bf16.mxu0 0
    %1026 = vmatpush2.bf16.msra.mxu0 0
    %1027 = vmatprep.subr.bf16.mxu0 0
    %1028 = vmatpush2.bf16.msra.mxu0 0
    %1029 = vmatprep.subr.bf16.mxu0 0
    %1030 = vmatpush2.bf16.msra.mxu0 0
    %1031 = vmatprep.mubr.bf16.mxu0 0
    %1032 = vmatmul.mubr.bf16.gmra.mxu0 %v997
    %v1033 = vpop.f32.mrf.mxu0
    %v1034 = vadd.f32 0.0, %v1033
    %v1035 = vpop.f32.mrf.mxu0
    %v1036 = vpop.f32.mrf.mxu0
    %v1037 = vpop.f32.mrf.mxu0
    %1038 = vdwg.mxu0
    %v1040 = vrot.slane %v1034, 4
    %v1041 = vrot.slane %v1034, 5
    %v1044 = vadd.f32 %v97, %v1040
    %v1045 = vadd.f32 %v100, %v1041
    %v1046 = vxor.u32 %v1044, 2147483648
    %v1047 = vxor.u32 %v1045, 2147483648
    %v1048 = vmul.f32 %v1046, 1.442695
    %v1049 = vpow.pop %v1048
    %v1050 = vmul.f32 %v1047, 1.442695
    %v1051 = vpow.pop %v1050
    %v1052 = vadd.f32 %v1049, 1.0
    %v1053 = vadd.f32 %v1051, 1.0
    %v1054 = vrcp.pop %v1052
    %v1055 = vmul.f32 1.0, %v1054
    %v1056 = vrcp.pop %v1053
    %v1057 = vmul.f32 1.0, %v1056
    %v1058 = vadd.f32 %v1034, %v215
    %v1060 = vrot.slane %v1058, 4
    %v1061 = vrot.slane %v1058, 5
    %1062 = vrot.lane.b32.xlu0 %v1060, 64
    %v1063 = vpop.permute.xlu0 %1062
    %1064 = vrot.lane.b32.xlu0 %v1061, 64
    %v1065 = vpop.permute.xlu0 %1064
    %v1068 = vmul.f32 %v1055, %v1063
    %v1069 = vmul.f32 %v1057, %v1065
    %1072 = vrot.lane.b32.xlu0 %v1068, 64
    %v1073 = vpop.permute.xlu0 %1072
    %1074 = vrot.lane.b32.xlu0 %v1069, 64
    %v1075 = vpop.permute.xlu0 %1074
    %v1078 = vadd.f32 %v97, %v1073
    %v1079 = vadd.f32 %v100, %v1075
    %v1080 = vtanh.pop %v1078
    %v1081 = vtanh.pop %v1079
    %v1082 = vsub.f32 1.0, %v1055
    %v1083 = vsub.f32 1.0, %v1057
    %1086 = vrot.lane.b32.xlu0 %v1080, 96
    %v1087 = vpop.permute.xlu0 %1086
    %1088 = vrot.lane.b32.xlu0 %v1081, 96
    %v1089 = vpop.permute.xlu0 %1088
    %v1092 = vmul.f32 %v1082, %v1087
    %v1093 = vmul.f32 %v1083, %v1089
    %v1094 = vrot.slane %v890, 7
    %v1097 = vmul.f32 %v1055, %v1094
    %v1098 = vmul.f32 %v1057, %v894
    %v1099 = vadd.f32 %v1092, %v1097
    %v1100 = vadd.f32 %v1093, %v1098
    %v1103 = vrot.slane %v1100, 7
    %vm1104 = vcmask 1045509
    %v1105 = vsel %vm1104, %v1103, %v1099
    %1106 = vrot.lane.b32.xlu0 %v1105, 96
    %v1107 = vpop.permute.xlu0 %1106
    %v1110 = vrot.slane %v983, 4
    %v1112 = vsel %vm152, %v1107, %v1110
    %v1113 = vpack.c.bf16 %v1112, %v1112
    %v1115 = vrot.slane %v1113, 2
    %v1117 = vsel %vm290, %v1115, 0
    %1119 = vmatprep.subr.bf16.mxu0 0
    %1120 = vmatpush1.bf16.msra.mxu0 0
    %1121 = vmatprep.subr.bf16.mxu0 0
    %1122 = vmatpush1.bf16.msra.mxu0 0
    %1123 = vmatprep.subr.bf16.mxu0 0
    %1124 = vmatpush1.bf16.msra.mxu0 0
    %1125 = vmatprep.subr.bf16.mxu0 0
    %1126 = vmatpush1.bf16.msra.mxu0 0
    %1127 = vmatprep.subr.bf16.mxu0 0
    %1128 = vmatpush1.bf16.msra.mxu0 %v285
    %1129 = vmatprep.subr.bf16.mxu0 0
    %1130 = vmatpush1.bf16.msra.mxu0 %v284
    %1131 = vmatprep.subr.bf16.mxu0 0
    %1132 = vmatpush1.bf16.msra.mxu0 %v283
    %1133 = vmatprep.subr.bf16.mxu0 0
    %1134 = vmatpush1.bf16.msra.mxu0 %v282
    %1135 = vmatprep.subr.bf16.mxu0 0
    %1136 = vmatpush2.bf16.msra.mxu0 0
    %1137 = vmatprep.subr.bf16.mxu0 0
    %1138 = vmatpush2.bf16.msra.mxu0 0
    %1139 = vmatprep.subr.bf16.mxu0 0
    %1140 = vmatpush2.bf16.msra.mxu0 0
    %1141 = vmatprep.subr.bf16.mxu0 0
    %1142 = vmatpush2.bf16.msra.mxu0 0
    %1143 = vmatprep.subr.bf16.mxu0 0
    %1144 = vmatpush2.bf16.msra.mxu0 0
    %1145 = vmatprep.subr.bf16.mxu0 0
    %1146 = vmatpush2.bf16.msra.mxu0 0
    %1147 = vmatprep.subr.bf16.mxu0 0
    %1148 = vmatpush2.bf16.msra.mxu0 0
    %1149 = vmatprep.subr.bf16.mxu0 0
    %1150 = vmatpush2.bf16.msra.mxu0 0
    %1151 = vmatprep.mubr.bf16.mxu0 0
    %1152 = vmatmul.mubr.bf16.gmra.mxu0 %v1117
    %v1153 = vpop.f32.mrf.mxu0
    %v1154 = vadd.f32 0.0, %v1153
    %v1155 = vpop.f32.mrf.mxu0
    %v1156 = vpop.f32.mrf.mxu0
    %v1157 = vpop.f32.mrf.mxu0
    %1158 = vdwg.mxu0
    %v1159 = vadd.f32 %v1154, %v126
    %v1160 = vxor.u32 %v1159, 2147483648
    %v1161 = vmul.f32 %v1160, 1.442695
    %v1162 = vpow.pop %v1161
    %v1163 = vadd.f32 %v1162, 1.0
    %v1164 = vrcp.pop %v1163
    %v1165 = vmul.f32 1.0, %v1164
    %v1166 = vadd.f32 %v1154, %v342
    %v1167 = vadd.f32 %v1154, %v346
    %1169 = vrot.lane.b32.xlu0 %v1167, 32
    %v1170 = vpop.permute.xlu0 %1169
    %v1172 = vmul.f32 %v1165, %v1170
    %1174 = vrot.lane.b32.xlu0 %v1172, 64
    %v1175 = vpop.permute.xlu0 %1174
    %v1177 = vadd.f32 %v1166, %v1175
    %v1178 = vtanh.pop %v1177
    %v1179 = vsub.f32 1.0, %v1165
    %1181 = vrot.lane.b32.xlu0 %v1178, 96
    %v1182 = vpop.permute.xlu0 %1181
    %v1184 = vmul.f32 %v1179, %v1182
    %v1185 = vmul.f32 %v1165, %v983
    %v1186 = vadd.f32 %v1184, %v1185
    %v1187 = vpack.c.bf16 %v1099, %v1099
    %v1188 = vpack.c.bf16 %v1100, %v1100
    %v1191 = vunpack.c.l.b16 %v1187
    %v1192 = vunpack.c.l.b16 %v1188
    %v1193 = vrot.slane %v1191, 4
    %v1194 = vrot.slane %v1192, 3
    %v1195 = vsel %vm259, %v1194, %v1193
    %v1196 = vpack.c.b16 %v1195, %v1195
    %1197 = vrot.lane.b32.xlu0 %v1196, 96
    %v1198 = vpop.permute.xlu0 %1197
    %v1200 = vsel %vm152, %v1198, 0
    %1202 = vmatprep.subr.bf16.mxu0 0
    %1203 = vmatpush1.bf16.msra.mxu0 0
    %1204 = vmatprep.subr.bf16.mxu0 0
    %1205 = vmatpush1.bf16.msra.mxu0 0
    %1206 = vmatprep.subr.bf16.mxu0 0
    %1207 = vmatpush1.bf16.msra.mxu0 0
    %1208 = vmatprep.subr.bf16.mxu0 0
    %1209 = vmatpush1.bf16.msra.mxu0 0
    %1210 = vmatprep.subr.bf16.mxu0 0
    %1211 = vmatpush1.bf16.msra.mxu0 0
    %1212 = vmatprep.subr.bf16.mxu0 0
    %1213 = vmatpush1.bf16.msra.mxu0 0
    %1214 = vmatprep.subr.bf16.mxu0 0
    %1215 = vmatpush1.bf16.msra.mxu0 %v149
    %1216 = vmatprep.subr.bf16.mxu0 0
    %1217 = vmatpush1.bf16.msra.mxu0 %v148
    %1218 = vmatprep.subr.bf16.mxu0 0
    %1219 = vmatpush2.bf16.msra.mxu0 0
    %1220 = vmatprep.subr.bf16.mxu0 0
    %1221 = vmatpush2.bf16.msra.mxu0 0
    %1222 = vmatprep.subr.bf16.mxu0 0
    %1223 = vmatpush2.bf16.msra.mxu0 0
    %1224 = vmatprep.subr.bf16.mxu0 0
    %1225 = vmatpush2.bf16.msra.mxu0 0
    %1226 = vmatprep.subr.bf16.mxu0 0
    %1227 = vmatpush2.bf16.msra.mxu0 0
    %1228 = vmatprep.subr.bf16.mxu0 0
    %1229 = vmatpush2.bf16.msra.mxu0 0
    %1230 = vmatprep.subr.bf16.mxu0 0
    %1231 = vmatpush2.bf16.msra.mxu0 0
    %1232 = vmatprep.subr.bf16.mxu0 0
    %1233 = vmatpush2.bf16.msra.mxu0 0
    %1234 = vmatprep.mubr.bf16.mxu0 0
    %1235 = vmatmul.mubr.bf16.gmra.mxu0 %v1200
    %v1236 = vpop.f32.mrf.mxu0
    %v1237 = vadd.f32 0.0, %v1236
    %v1238 = vpop.f32.mrf.mxu0
    %v1239 = vpop.f32.mrf.mxu0
    %v1240 = vpop.f32.mrf.mxu0
    %1241 = vdwg.mxu0
    %v1243 = vrot.slane %v1237, 3
    %v1244 = vrot.slane %v1237, 4
    %v1247 = vadd.f32 %v97, %v1243
    %v1248 = vadd.f32 %v100, %v1244
    %v1249 = vxor.u32 %v1247, 2147483648
    %v1250 = vxor.u32 %v1248, 2147483648
    %v1251 = vmul.f32 %v1249, 1.442695
    %v1252 = vpow.pop %v1251
    %v1253 = vmul.f32 %v1250, 1.442695
    %v1254 = vpow.pop %v1253
    %v1255 = vadd.f32 %v1252, 1.0
    %v1256 = vadd.f32 %v1254, 1.0
    %v1257 = vrcp.pop %v1255
    %v1258 = vmul.f32 1.0, %v1257
    %v1259 = vrcp.pop %v1256
    %v1260 = vmul.f32 1.0, %v1259
    %v1261 = vadd.f32 %v1237, %v215
    %v1263 = vrot.slane %v1261, 3
    %v1264 = vrot.slane %v1261, 4
    %1265 = vrot.lane.b32.xlu0 %v1263, 64
    %v1266 = vpop.permute.xlu0 %1265
    %1267 = vrot.lane.b32.xlu0 %v1264, 64
    %v1268 = vpop.permute.xlu0 %1267
    %v1271 = vmul.f32 %v1258, %v1266
    %v1272 = vmul.f32 %v1260, %v1268
    %1275 = vrot.lane.b32.xlu0 %v1271, 64
    %v1276 = vpop.permute.xlu0 %1275
    %1277 = vrot.lane.b32.xlu0 %v1272, 64
    %v1278 = vpop.permute.xlu0 %1277
    %v1281 = vadd.f32 %v97, %v1276
    %v1282 = vadd.f32 %v100, %v1278
    %v1283 = vtanh.pop %v1281
    %v1284 = vtanh.pop %v1282
    %v1285 = vsub.f32 1.0, %v1258
    %v1286 = vsub.f32 1.0, %v1260
    %1289 = vrot.lane.b32.xlu0 %v1283, 96
    %v1290 = vpop.permute.xlu0 %1289
    %1291 = vrot.lane.b32.xlu0 %v1284, 96
    %v1292 = vpop.permute.xlu0 %1291
    %v1295 = vmul.f32 %v1285, %v1290
    %v1296 = vmul.f32 %v1286, %v1292
    %v1297 = vrot.slane %v1099, 7
    %v1300 = vmul.f32 %v1258, %v1297
    %v1301 = vmul.f32 %v1260, %v1103
    %v1302 = vadd.f32 %v1295, %v1300
    %v1303 = vadd.f32 %v1296, %v1301
    %v1306 = vrot.slane %v1303, 7
    %vm1307 = vcmask 1046534
    %v1308 = vsel %vm1307, %v1306, %v1302
    %1309 = vrot.lane.b32.xlu0 %v1308, 96
    %v1310 = vpop.permute.xlu0 %1309
    %v1313 = vrot.slane %v1186, 3
    %v1315 = vsel %vm152, %v1310, %v1313
    %v1316 = vpack.c.bf16 %v1315, %v1315
    %v1318 = vshrl.u32 %v1316, 16
    %v1320 = vrot.slane %v1318, 2
    %v1321 = vshll.u32 %v1316, 16
    %v1323 = vrot.slane %v1321, 3
    %v1324 = vor.u32 %v1320, %v1323
    %v1326 = vsel %vm290, %v1324, 0
    %1328 = vmatprep.subr.bf16.mxu0 0
    %1329 = vmatpush1.bf16.msra.mxu0 0
    %1330 = vmatprep.subr.bf16.mxu0 0
    %1331 = vmatpush1.bf16.msra.mxu0 0
    %1332 = vmatprep.subr.bf16.mxu0 0
    %1333 = vmatpush1.bf16.msra.mxu0 0
    %1334 = vmatprep.subr.bf16.mxu0 0
    %1335 = vmatpush1.bf16.msra.mxu0 0
    %1336 = vmatprep.subr.bf16.mxu0 0
    %1337 = vmatpush1.bf16.msra.mxu0 %v285
    %1338 = vmatprep.subr.bf16.mxu0 0
    %1339 = vmatpush1.bf16.msra.mxu0 %v284
    %1340 = vmatprep.subr.bf16.mxu0 0
    %1341 = vmatpush1.bf16.msra.mxu0 %v283
    %1342 = vmatprep.subr.bf16.mxu0 0
    %1343 = vmatpush1.bf16.msra.mxu0 %v282
    %1344 = vmatprep.subr.bf16.mxu0 0
    %1345 = vmatpush2.bf16.msra.mxu0 0
    %1346 = vmatprep.subr.bf16.mxu0 0
    %1347 = vmatpush2.bf16.msra.mxu0 0
    %1348 = vmatprep.subr.bf16.mxu0 0
    %1349 = vmatpush2.bf16.msra.mxu0 0
    %1350 = vmatprep.subr.bf16.mxu0 0
    %1351 = vmatpush2.bf16.msra.mxu0 0
    %1352 = vmatprep.subr.bf16.mxu0 0
    %1353 = vmatpush2.bf16.msra.mxu0 0
    %1354 = vmatprep.subr.bf16.mxu0 0
    %1355 = vmatpush2.bf16.msra.mxu0 0
    %1356 = vmatprep.subr.bf16.mxu0 0
    %1357 = vmatpush2.bf16.msra.mxu0 0
    %1358 = vmatprep.subr.bf16.mxu0 0
    %1359 = vmatpush2.bf16.msra.mxu0 0
    %1360 = vmatprep.mubr.bf16.mxu0 0
    %1361 = vmatmul.mubr.bf16.gmra.mxu0 %v1326
    %v1362 = vpop.f32.mrf.mxu0
    %v1363 = vadd.f32 0.0, %v1362
    %v1364 = vpop.f32.mrf.mxu0
    %v1365 = vpop.f32.mrf.mxu0
    %v1366 = vpop.f32.mrf.mxu0
    %1367 = vdwg.mxu0
    %v1368 = vadd.f32 %v1363, %v126
    %v1369 = vxor.u32 %v1368, 2147483648
    %v1370 = vmul.f32 %v1369, 1.442695
    %v1371 = vpow.pop %v1370
    %v1372 = vadd.f32 %v1371, 1.0
    %v1373 = vrcp.pop %v1372
    %v1374 = vmul.f32 1.0, %v1373
    %v1375 = vadd.f32 %v1363, %v342
    %v1376 = vadd.f32 %v1363, %v346
    %1378 = vrot.lane.b32.xlu0 %v1376, 32
    %v1379 = vpop.permute.xlu0 %1378
    %v1381 = vmul.f32 %v1374, %v1379
    %1383 = vrot.lane.b32.xlu0 %v1381, 64
    %v1384 = vpop.permute.xlu0 %1383
    %v1386 = vadd.f32 %v1375, %v1384
    %v1387 = vtanh.pop %v1386
    %v1388 = vsub.f32 1.0, %v1374
    %1390 = vrot.lane.b32.xlu0 %v1387, 96
    %v1391 = vpop.permute.xlu0 %1390
    %v1393 = vmul.f32 %v1388, %v1391
    %v1394 = vmul.f32 %v1374, %v1186
    %v1395 = vadd.f32 %v1393, %v1394
    %v1396 = vpack.c.bf16 %v1302, %v1302
    %v1397 = vpack.c.bf16 %v1303, %v1303
    %v1400 = vunpack.c.l.b16 %v1396
    %v1401 = vunpack.c.l.b16 %v1397
    %v1402 = vrot.slane %v1400, 5
    %v1403 = vrot.slane %v1401, 4
    %v1404 = vsel %vm259, %v1403, %v1402
    %v1405 = vpack.c.b16 %v1404, %v1404
    %1406 = vrot.lane.b32.xlu0 %v1405, 96
    %v1407 = vpop.permute.xlu0 %1406
    %v1409 = vsel %vm152, %v1407, 0
    %1411 = vmatprep.subr.bf16.mxu0 0
    %1412 = vmatpush1.bf16.msra.mxu0 0
    %1413 = vmatprep.subr.bf16.mxu0 0
    %1414 = vmatpush1.bf16.msra.mxu0 0
    %1415 = vmatprep.subr.bf16.mxu0 0
    %1416 = vmatpush1.bf16.msra.mxu0 0
    %1417 = vmatprep.subr.bf16.mxu0 0
    %1418 = vmatpush1.bf16.msra.mxu0 0
    %1419 = vmatprep.subr.bf16.mxu0 0
    %1420 = vmatpush1.bf16.msra.mxu0 0
    %1421 = vmatprep.subr.bf16.mxu0 0
    %1422 = vmatpush1.bf16.msra.mxu0 0
    %1423 = vmatprep.subr.bf16.mxu0 0
    %1424 = vmatpush1.bf16.msra.mxu0 %v149
    %1425 = vmatprep.subr.bf16.mxu0 0
    %1426 = vmatpush1.bf16.msra.mxu0 %v148
    %1427 = vmatprep.subr.bf16.mxu0 0
    %1428 = vmatpush2.bf16.msra.mxu0 0
    %1429 = vmatprep.subr.bf16.mxu0 0
    %1430 = vmatpush2.bf16.msra.mxu0 0
    %1431 = vmatprep.subr.bf16.mxu0 0
    %1432 = vmatpush2.bf16.msra.mxu0 0
    %1433 = vmatprep.subr.bf16.mxu0 0
    %1434 = vmatpush2.bf16.msra.mxu0 0
    %1435 = vmatprep.subr.bf16.mxu0 0
    %1436 = vmatpush2.bf16.msra.mxu0 0
    %1437 = vmatprep.subr.bf16.mxu0 0
    %1438 = vmatpush2.bf16.msra.mxu0 0
    %1439 = vmatprep.subr.bf16.mxu0 0
    %1440 = vmatpush2.bf16.msra.mxu0 0
    %1441 = vmatprep.subr.bf16.mxu0 0
    %1442 = vmatpush2.bf16.msra.mxu0 0
    %1443 = vmatprep.mubr.bf16.mxu0 0
    %1444 = vmatmul.mubr.bf16.gmra.mxu0 %v1409
    %v1445 = vpop.f32.mrf.mxu0
    %v1446 = vadd.f32 0.0, %v1445
    %v1447 = vpop.f32.mrf.mxu0
    %v1448 = vpop.f32.mrf.mxu0
    %v1449 = vpop.f32.mrf.mxu0
    %1450 = vdwg.mxu0
    %v1452 = vrot.slane %v1446, 2
    %v1453 = vrot.slane %v1446, 3
    %v1456 = vadd.f32 %v97, %v1452
    %v1457 = vadd.f32 %v100, %v1453
    %v1458 = vxor.u32 %v1456, 2147483648
    %v1459 = vxor.u32 %v1457, 2147483648
    %v1460 = vmul.f32 %v1458, 1.442695
    %v1461 = vpow.pop %v1460
    %v1462 = vmul.f32 %v1459, 1.442695
    %v1463 = vpow.pop %v1462
    %v1464 = vadd.f32 %v1461, 1.0
    %v1465 = vadd.f32 %v1463, 1.0
    %v1466 = vrcp.pop %v1464
    %v1467 = vmul.f32 1.0, %v1466
    %v1468 = vrcp.pop %v1465
    %v1469 = vmul.f32 1.0, %v1468
    %v1470 = vadd.f32 %v1446, %v215
    %v1472 = vrot.slane %v1470, 2
    %v1473 = vrot.slane %v1470, 3
    %1474 = vrot.lane.b32.xlu0 %v1472, 64
    %v1475 = vpop.permute.xlu0 %1474
    %1476 = vrot.lane.b32.xlu0 %v1473, 64
    %v1477 = vpop.permute.xlu0 %1476
    %v1480 = vmul.f32 %v1467, %v1475
    %v1481 = vmul.f32 %v1469, %v1477
    %1484 = vrot.lane.b32.xlu0 %v1480, 64
    %v1485 = vpop.permute.xlu0 %1484
    %1486 = vrot.lane.b32.xlu0 %v1481, 64
    %v1487 = vpop.permute.xlu0 %1486
    %v1490 = vadd.f32 %v97, %v1485
    %v1491 = vadd.f32 %v100, %v1487
    %v1492 = vtanh.pop %v1490
    %v1493 = vtanh.pop %v1491
    %v1494 = vsub.f32 1.0, %v1467
    %v1495 = vsub.f32 1.0, %v1469
    %1498 = vrot.lane.b32.xlu0 %v1492, 96
    %v1499 = vpop.permute.xlu0 %1498
    %1500 = vrot.lane.b32.xlu0 %v1493, 96
    %v1501 = vpop.permute.xlu0 %1500
    %v1504 = vmul.f32 %v1494, %v1499
    %v1505 = vmul.f32 %v1495, %v1501
    %v1506 = vrot.slane %v1302, 7
    %v1509 = vmul.f32 %v1467, %v1506
    %v1510 = vmul.f32 %v1469, %v1306
    %v1511 = vadd.f32 %v1504, %v1509
    %v1512 = vadd.f32 %v1505, %v1510
    %v1515 = vrot.slane %v1512, 7
    %vm1516 = vcmask 1047559
    %v1517 = vsel %vm1516, %v1515, %v1511
    %1518 = vrot.lane.b32.xlu0 %v1517, 96
    %v1519 = vpop.permute.xlu0 %1518
    %v1522 = vrot.slane %v1395, 2
    %v1524 = vsel %vm152, %v1519, %v1522
    %v1525 = vpack.c.bf16 %v1524, %v1524
    %v1527 = vrot.slane %v1525, 3
    %v1529 = vsel %vm290, %v1527, 0
    %1531 = vmatprep.subr.bf16.mxu0 0
    %1532 = vmatpush1.bf16.msra.mxu0 0
    %1533 = vmatprep.subr.bf16.mxu0 0
    %1534 = vmatpush1.bf16.msra.mxu0 0
    %1535 = vmatprep.subr.bf16.mxu0 0
    %1536 = vmatpush1.bf16.msra.mxu0 0
    %1537 = vmatprep.subr.bf16.mxu0 0
    %1538 = vmatpush1.bf16.msra.mxu0 0
    %1539 = vmatprep.subr.bf16.mxu0 0
    %1540 = vmatpush1.bf16.msra.mxu0 %v285
    %1541 = vmatprep.subr.bf16.mxu0 0
    %1542 = vmatpush1.bf16.msra.mxu0 %v284
    %1543 = vmatprep.subr.bf16.mxu0 0
    %1544 = vmatpush1.bf16.msra.mxu0 %v283
    %1545 = vmatprep.subr.bf16.mxu0 0
    %1546 = vmatpush1.bf16.msra.mxu0 %v282
    %1547 = vmatprep.subr.bf16.mxu0 0
    %1548 = vmatpush2.bf16.msra.mxu0 0
    %1549 = vmatprep.subr.bf16.mxu0 0
    %1550 = vmatpush2.bf16.msra.mxu0 0
    %1551 = vmatprep.subr.bf16.mxu0 0
    %1552 = vmatpush2.bf16.msra.mxu0 0
    %1553 = vmatprep.subr.bf16.mxu0 0
    %1554 = vmatpush2.bf16.msra.mxu0 0
    %1555 = vmatprep.subr.bf16.mxu0 0
    %1556 = vmatpush2.bf16.msra.mxu0 0
    %1557 = vmatprep.subr.bf16.mxu0 0
    %1558 = vmatpush2.bf16.msra.mxu0 0
    %1559 = vmatprep.subr.bf16.mxu0 0
    %1560 = vmatpush2.bf16.msra.mxu0 0
    %1561 = vmatprep.subr.bf16.mxu0 0
    %1562 = vmatpush2.bf16.msra.mxu0 0
    %1563 = vmatprep.mubr.bf16.mxu0 0
    %1564 = vmatmul.mubr.bf16.gmra.mxu0 %v1529
    %v1565 = vpop.f32.mrf.mxu0
    %v1566 = vadd.f32 0.0, %v1565
    %v1567 = vpop.f32.mrf.mxu0
    %v1568 = vpop.f32.mrf.mxu0
    %v1569 = vpop.f32.mrf.mxu0
    %1570 = vdwg.mxu0
    %v1571 = vadd.f32 %v1566, %v126
    %v1572 = vxor.u32 %v1571, 2147483648
    %v1573 = vmul.f32 %v1572, 1.442695
    %v1574 = vpow.pop %v1573
    %v1575 = vadd.f32 %v1574, 1.0
    %v1576 = vrcp.pop %v1575
    %v1577 = vmul.f32 1.0, %v1576
    %v1578 = vadd.f32 %v1566, %v342
    %v1579 = vadd.f32 %v1566, %v346
    %1581 = vrot.lane.b32.xlu0 %v1579, 32
    %v1582 = vpop.permute.xlu0 %1581
    %v1584 = vmul.f32 %v1577, %v1582
    %1586 = vrot.lane.b32.xlu0 %v1584, 64
    %v1587 = vpop.permute.xlu0 %1586
    %v1589 = vadd.f32 %v1578, %v1587
    %v1590 = vtanh.pop %v1589
    %v1591 = vsub.f32 1.0, %v1577
    %1593 = vrot.lane.b32.xlu0 %v1590, 96
    %v1594 = vpop.permute.xlu0 %1593
    %v1596 = vmul.f32 %v1591, %v1594
    %v1597 = vmul.f32 %v1577, %v1395
    %v1598 = vadd.f32 %v1596, %v1597
    %v1599 = vpack.c.bf16 %v1511, %v1511
    %v1600 = vpack.c.bf16 %v1512, %v1512
    %v1603 = vunpack.c.l.b16 %v1599
    %v1604 = vunpack.c.l.b16 %v1600
    %v1605 = vrot.slane %v1603, 6
    %v1606 = vrot.slane %v1604, 5
    %v1607 = vsel %vm259, %v1606, %v1605
    %v1608 = vpack.c.b16 %v1607, %v1607
    %1609 = vrot.lane.b32.xlu0 %v1608, 96
    %v1610 = vpop.permute.xlu0 %1609
    %v1612 = vsel %vm152, %v1610, 0
    %1614 = vmatprep.subr.bf16.mxu0 0
    %1615 = vmatpush1.bf16.msra.mxu0 0
    %1616 = vmatprep.subr.bf16.mxu0 0
    %1617 = vmatpush1.bf16.msra.mxu0 0
    %1618 = vmatprep.subr.bf16.mxu0 0
    %1619 = vmatpush1.bf16.msra.mxu0 0
    %1620 = vmatprep.subr.bf16.mxu0 0
    %1621 = vmatpush1.bf16.msra.mxu0 0
    %1622 = vmatprep.subr.bf16.mxu0 0
    %1623 = vmatpush1.bf16.msra.mxu0 0
    %1624 = vmatprep.subr.bf16.mxu0 0
    %1625 = vmatpush1.bf16.msra.mxu0 0
    %1626 = vmatprep.subr.bf16.mxu0 0
    %1627 = vmatpush1.bf16.msra.mxu0 %v149
    %1628 = vmatprep.subr.bf16.mxu0 0
    %1629 = vmatpush1.bf16.msra.mxu0 %v148
    %1630 = vmatprep.subr.bf16.mxu0 0
    %1631 = vmatpush2.bf16.msra.mxu0 0
    %1632 = vmatprep.subr.bf16.mxu0 0
    %1633 = vmatpush2.bf16.msra.mxu0 0
    %1634 = vmatprep.subr.bf16.mxu0 0
    %1635 = vmatpush2.bf16.msra.mxu0 0
    %1636 = vmatprep.subr.bf16.mxu0 0
    %1637 = vmatpush2.bf16.msra.mxu0 0
    %1638 = vmatprep.subr.bf16.mxu0 0
    %1639 = vmatpush2.bf16.msra.mxu0 0
    %1640 = vmatprep.subr.bf16.mxu0 0
    %1641 = vmatpush2.bf16.msra.mxu0 0
    %1642 = vmatprep.subr.bf16.mxu0 0
    %1643 = vmatpush2.bf16.msra.mxu0 0
    %1644 = vmatprep.subr.bf16.mxu0 0
    %1645 = vmatpush2.bf16.msra.mxu0 0
    %1646 = vmatprep.mubr.bf16.mxu0 0
    %1647 = vmatmul.mubr.bf16.gmra.mxu0 %v1612
    %v1648 = vpop.f32.mrf.mxu0
    %v1649 = vadd.f32 0.0, %v1648
    %v1650 = vpop.f32.mrf.mxu0
    %v1651 = vpop.f32.mrf.mxu0
    %v1652 = vpop.f32.mrf.mxu0
    %1653 = vdwg.mxu0
    %v1655 = vrot.slane %v1649, 1
    %v1656 = vrot.slane %v1649, 2
    %v1659 = vadd.f32 %v97, %v1655
    %v1660 = vadd.f32 %v100, %v1656
    %v1661 = vxor.u32 %v1659, 2147483648
    %v1662 = vxor.u32 %v1660, 2147483648
    %v1663 = vmul.f32 %v1661, 1.442695
    %v1664 = vpow.pop %v1663
    %v1665 = vmul.f32 %v1662, 1.442695
    %v1666 = vpow.pop %v1665
    %v1667 = vadd.f32 %v1664, 1.0
    %v1668 = vadd.f32 %v1666, 1.0
    %v1669 = vrcp.pop %v1667
    %v1670 = vmul.f32 1.0, %v1669
    %v1671 = vrcp.pop %v1668
    %v1672 = vmul.f32 1.0, %v1671
    %v1673 = vadd.f32 %v1649, %v215
    %v1675 = vrot.slane %v1673, 1
    %v1676 = vrot.slane %v1673, 2
    %1677 = vrot.lane.b32.xlu0 %v1675, 64
    %v1678 = vpop.permute.xlu0 %1677
    %1679 = vrot.lane.b32.xlu0 %v1676, 64
    %v1680 = vpop.permute.xlu0 %1679
    %v1683 = vmul.f32 %v1670, %v1678
    %v1684 = vmul.f32 %v1672, %v1680
    %1687 = vrot.lane.b32.xlu0 %v1683, 64
    %v1688 = vpop.permute.xlu0 %1687
    %1689 = vrot.lane.b32.xlu0 %v1684, 64
    %v1690 = vpop.permute.xlu0 %1689
    %v1693 = vadd.f32 %v97, %v1688
    %v1694 = vadd.f32 %v100, %v1690
    %v1695 = vtanh.pop %v1693
    %v1696 = vtanh.pop %v1694
    %v1697 = vsub.f32 1.0, %v1670
    %v1698 = vsub.f32 1.0, %v1672
    %1701 = vrot.lane.b32.xlu0 %v1695, 96
    %v1702 = vpop.permute.xlu0 %1701
    %1703 = vrot.lane.b32.xlu0 %v1696, 96
    %v1704 = vpop.permute.xlu0 %1703
    %v1707 = vmul.f32 %v1697, %v1702
    %v1708 = vmul.f32 %v1698, %v1704
    %v1709 = vrot.slane %v1511, 7
    %v1712 = vmul.f32 %v1670, %v1709
    %v1713 = vmul.f32 %v1672, %v1515
    %v1714 = vadd.f32 %v1707, %v1712
    %v1715 = vadd.f32 %v1708, %v1713
    %v1718 = vrot.slane %v1715, 7
    %1719 = vrot.lane.b32.xlu0 %v1714, 96
    %v1720 = vpop.permute.xlu0 %1719
    %1721 = vrot.lane.b32.xlu0 %v1718, 96
    %v1722 = vpop.permute.xlu0 %1721
    %v1726 = vrot.slane %v1598, 1
    %v1728 = vsel %vm152, %v1720, %v1726
    %v1729 = vsel %vm152, %v1722, %v1726
    %v1730 = vpack.c.bf16 %v1729, %v1728
    %v1732 = vshrl.u32 %v1730, 16
    %v1734 = vrot.slane %v1732, 3
    %v1735 = vshll.u32 %v1730, 16
    %v1737 = vrot.slane %v1735, 4
    %v1738 = vor.u32 %v1734, %v1737
    %v1740 = vsel %vm290, %v1738, 0
    %1742 = vmatprep.subr.bf16.mxu0 0
    %1743 = vmatpush1.bf16.msra.mxu0 0
    %1744 = vmatprep.subr.bf16.mxu0 0
    %1745 = vmatpush1.bf16.msra.mxu0 0
    %1746 = vmatprep.subr.bf16.mxu0 0
    %1747 = vmatpush1.bf16.msra.mxu0 0
    %1748 = vmatprep.subr.bf16.mxu0 0
    %1749 = vmatpush1.bf16.msra.mxu0 0
    %1750 = vmatprep.subr.bf16.mxu0 0
    %1751 = vmatpush1.bf16.msra.mxu0 %v285
    %1752 = vmatprep.subr.bf16.mxu0 0
    %1753 = vmatpush1.bf16.msra.mxu0 %v284
    %1754 = vmatprep.subr.bf16.mxu0 0
    %1755 = vmatpush1.bf16.msra.mxu0 %v283
    %1756 = vmatprep.subr.bf16.mxu0 0
    %1757 = vmatpush1.bf16.msra.mxu0 %v282
    %1758 = vmatprep.subr.bf16.mxu0 0
    %1759 = vmatpush2.bf16.msra.mxu0 0
    %1760 = vmatprep.subr.bf16.mxu0 0
    %1761 = vmatpush2.bf16.msra.mxu0 0
    %1762 = vmatprep.subr.bf16.mxu0 0
    %1763 = vmatpush2.bf16.msra.mxu0 0
    %1764 = vmatprep.subr.bf16.mxu0 0
    %1765 = vmatpush2.bf16.msra.mxu0 0
    %1766 = vmatprep.subr.bf16.mxu0 0
    %1767 = vmatpush2.bf16.msra.mxu0 0
    %1768 = vmatprep.subr.bf16.mxu0 0
    %1769 = vmatpush2.bf16.msra.mxu0 0
    %1770 = vmatprep.subr.bf16.mxu0 0
    %1771 = vmatpush2.bf16.msra.mxu0 0
    %1772 = vmatprep.subr.bf16.mxu0 0
    %1773 = vmatpush2.bf16.msra.mxu0 0
    %1774 = vmatprep.mubr.bf16.mxu0 0
    %1775 = vmatmul.mubr.bf16.gmra.mxu0 %v1740
    %v1776 = vpop.f32.mrf.mxu0
    %v1777 = vadd.f32 0.0, %v1776
    %v1778 = vpop.f32.mrf.mxu0
    %v1779 = vpop.f32.mrf.mxu0
    %v1780 = vpop.f32.mrf.mxu0
    %1781 = vdwg.mxu0
    %v1782 = vadd.f32 %v1777, %v126
    %v1783 = vxor.u32 %v1782, 2147483648
    %v1784 = vmul.f32 %v1783, 1.442695
    %v1785 = vpow.pop %v1784
    %v1786 = vadd.f32 %v1785, 1.0
    %v1787 = vrcp.pop %v1786
    %v1788 = vmul.f32 1.0, %v1787
    %v1789 = vadd.f32 %v1777, %v342
    %v1790 = vadd.f32 %v1777, %v346
    %1792 = vrot.lane.b32.xlu0 %v1790, 32
    %v1793 = vpop.permute.xlu0 %1792
    %v1795 = vmul.f32 %v1788, %v1793
    %1797 = vrot.lane.b32.xlu0 %v1795, 64
    %v1798 = vpop.permute.xlu0 %1797
    %v1800 = vadd.f32 %v1789, %v1798
    %v1801 = vtanh.pop %v1800
    %v1802 = vsub.f32 1.0, %v1788
    %1804 = vrot.lane.b32.xlu0 %v1801, 96
    %v1805 = vpop.permute.xlu0 %1804
    %v1807 = vmul.f32 %v1802, %v1805
    %v1808 = vmul.f32 %v1788, %v1598
    %v1809 = vadd.f32 %v1807, %v1808
    %v1810 = vpack.c.bf16 %v1809, %v1809
    %v1811 = vld [vmem:[%s9] sm:$0xf]
    %v1812 = vld [vmem:[%s9 + $0x4] sm:$0xf]
    %v1813 = vld [vmem:[%s9 + $0x8] sm:$0xf]
    %v1814 = vld [vmem:[%s9 + $0xc] sm:$0xf]
    %v1815 = vld [vmem:[%s10] sm:$0x1]
    %v1817 = vlaneseq
    %v1818 = vshrl.u32 %v1817, 7
    %v1819 = vsub.s32 0, %v1818
    %v1820 = vrot.slane %v1815, %v1819
    %1823 = vrot.lane.b32.xlu0 %v1810, 96
    %v1824 = vpop.permute.xlu0 %1823
    %v1829 = vunpack.c.l.b16 %v1811
    %v1830 = vunpack.c.l.b16 %v1812
    %v1831 = vunpack.c.l.b16 %v1813
    %v1832 = vunpack.c.l.b16 %v1814
    %v1833 = vpack.c.b16 %v1830, %v1829
    %v1834 = vpack.c.b16 %v1832, %v1831
    %v1838 = vsel %vm152, %v1824, 0
    %1840 = vmatprep.subr.bf16.mxu0 0
    %1841 = vmatpush1.bf16.msra.mxu0 0
    %1842 = vmatprep.subr.bf16.mxu0 0
    %1843 = vmatpush1.bf16.msra.mxu0 0
    %1844 = vmatprep.subr.bf16.mxu0 0
    %1845 = vmatpush1.bf16.msra.mxu0 0
    %1846 = vmatprep.subr.bf16.mxu0 0
    %1847 = vmatpush1.bf16.msra.mxu0 0
    %1848 = vmatprep.subr.bf16.mxu0 0
    %1849 = vmatpush1.bf16.msra.mxu0 0
    %1850 = vmatprep.subr.bf16.mxu0 0
    %1851 = vmatpush1.bf16.msra.mxu0 0
    %1852 = vmatprep.subr.bf16.mxu0 0
    %1853 = vmatpush1.bf16.msra.mxu0 %v1834
    %1854 = vmatprep.subr.bf16.mxu0 0
    %1855 = vmatpush1.bf16.msra.mxu0 %v1833
    %1856 = vmatprep.subr.bf16.mxu0 0
    %1857 = vmatpush2.bf16.msra.mxu0 0
    %1858 = vmatprep.subr.bf16.mxu0 0
    %1859 = vmatpush2.bf16.msra.mxu0 0
    %1860 = vmatprep.subr.bf16.mxu0 0
    %1861 = vmatpush2.bf16.msra.mxu0 0
    %1862 = vmatprep.subr.bf16.mxu0 0
    %1863 = vmatpush2.bf16.msra.mxu0 0
    %1864 = vmatprep.subr.bf16.mxu0 0
    %1865 = vmatpush2.bf16.msra.mxu0 0
    %1866 = vmatprep.subr.bf16.mxu0 0
    %1867 = vmatpush2.bf16.msra.mxu0 0
    %1868 = vmatprep.subr.bf16.mxu0 0
    %1869 = vmatpush2.bf16.msra.mxu0 0
    %1870 = vmatprep.subr.bf16.mxu0 0
    %1871 = vmatpush2.bf16.msra.mxu0 0
    %1872 = vmatprep.mubr.bf16.mxu0 0
    %1873 = vmatmul.mubr.bf16.gmra.mxu0 %v1838
    %v1874 = vpop.f32.mrf.mxu0
    %v1875 = vadd.f32 %v1820, %v1874
    %v1876 = vpop.f32.mrf.mxu0
    %v1877 = vpop.f32.mrf.mxu0
    %v1878 = vpop.f32.mrf.mxu0
    %1879 = vdwg.mxu0
    %vm1880 = vcmask 58368
    %1881 = vst.msk [vmem:[#allocation2] sm:$0x3] %vm1880, %v1875
    // Predicated region
    $region46: #{gru_net_forward.1} parent=1 // pred_check
      _
    $region47: #{gru_net_forward.1} parent=1 // pred_check_branch
      %1883 = sbr.rel (0) target = $region49
    $region48: #{gru_net_forward.1} parent=1 // pred_region
      %s1885 = ssub.s32 32, 32
      %1886 = vsyncadd [#allocation3], %s1885
      %s1888 = sshll.u32 [#allocation2], 4
      %s1889 = int_to_ptr.vmem [resolvable:$true] %s1888
      %1891 = dma.vmem_to_hbm [thread:$0]  %s1889, 32, %s11, [#allocation3]
    $region49: #{gru_net_forward.1} parent=1 // pred_fallthru
      _
    // Predicated region
    $region50: #{gru_net_forward.1} parent=1 // pred_check
      _
    $region51: #{gru_net_forward.1} parent=1 // pred_check_branch
      %1893 = sbr.rel (0) target = $region53
    $region52: #{gru_net_forward.1} parent=1 // pred_region
      %1894 = dma.done [#allocation3], 32
    $region53: #{gru_net_forward.1} parent=1 // pred_fallthru
      _
    %1895 = vsyncpa [#allocation3], 1

</llo_original>
